<compile_context>
chip_gen: v6e
topology: v6e:2x2x1
jax: 0.10.0
libtpu: 0.0.40
codegen_flags: <defaults>
</compile_context>

<pallas_src>
import math
from functools import partial

import jax
import jax.numpy as jnp
from jax.experimental import pallas as pl
from jax.experimental.pallas import tpu as pltpu

LOG_STD_MIN = -20.0
LOG_STD_MAX = 2.0
_LOG_2PI = math.log(2.0 * math.pi)
_LOG_2 = math.log(2.0)

_OUT_LANES = 128      # lane-dense output width
_HEAD_LANES = 256     # fused head: mu -> lanes 0:128, log_std -> lanes 128:256


def _round_up(n, m):
    return ((n + m - 1) // m) * m


def _cdiv(a, b):
    return -(-a // b)


def pi_kernel(xe_ref, w1_ref, b1_ref, w2_ref, b2_ref, wh_ref, bh_ref,
              bounds_ref, out_ref, *, state_dim, state_lanes, action_dim):
    """One batch tile: 2-layer ReLU MLP -> fused (mu|log_std) head -> rsample
    -> tanh-squashed log-prob.  Output slab (bt, 128): act in lanes 0:A,
    logp in lane A, zeros elsewhere (single full-width store)."""
    S, A = state_dim, action_dim

    # fused input slab: x in lanes 0:S, eps (zero-padded to 128) in lanes 128+
    x = xe_ref[:, :S]
    eps = xe_ref[:, state_lanes:]                     # (bt, 128), 0 beyond A

    # MLP (MXU matmuls, f32 accumulation)
    h1 = jnp.dot(x, w1_ref[...], preferred_element_type=jnp.float32) + b1_ref[...]
    h1 = jnp.maximum(h1, 0.0)
    h2 = jnp.dot(h1, w2_ref[...], preferred_element_type=jnp.float32) + b2_ref[...]
    h2 = jnp.maximum(h2, 0.0)

    # fused head: one (256, 256) matmul; mu / log_std are whole-lane-group slices
    head = jnp.dot(h2, wh_ref[...], preferred_element_type=jnp.float32) + bh_ref[...]
    mu = head[:, :128]                                 # 0 in padded lanes
    log_std = jnp.clip(head[:, 128:], LOG_STD_MIN, LOG_STD_MAX)   # 0 in padded lanes
    std = jnp.exp(log_std)                             # 1 in padded lanes

    # rsample: out = mu + std * eps  (eps drawn outside the kernel)
    out = mu + std * eps                               # 0 in padded lanes

    # Normal(mu, std).log_prob(out) summed over actions; z = (out-mu)/std == eps.
    # Padded lanes contribute exactly 0 to both sums, so summing 128 lanes is exact.
    logp = (jnp.sum(-0.5 * eps * eps - log_std, axis=-1, keepdims=True)
            - 0.5 * A * _LOG_2PI)

    # tanh-squash correction:  -= sum( 2*(log 2 - out - softplus(-2*out)) )
    neg2 = -2.0 * out
    softplus = jnp.maximum(neg2, 0.0) + jnp.log1p(jnp.exp(-jnp.abs(neg2)))
    corr = 2.0 * (_LOG_2 - out - softplus)             # 0 in padded lanes
    logp = logp - jnp.sum(corr, axis=-1, keepdims=True)

    # squash, scale by per-dimension bounds (0 in padded lanes), pack lane-dense
    act = jnp.tanh(out) * bounds_ref[...]
    lane = jax.lax.broadcasted_iota(jnp.int32, act.shape, 1)
    out_ref[...] = jnp.where(lane == A, logp, act)     # one dense 128-wide store


def _choose_batch_tile(B, *, block_batch, single_tile_max, num_tensorcores):
    """Pick the batch tile: one tile for small B, ~block_batch tiles for large B,
    and at least num_tensorcores tiles when megacore sharding is requested."""
    min_steps = max(1, num_tensorcores) if B >= 64 * max(1, num_tensorcores) else 1
    if B <= single_tile_max and min_steps == 1:
        steps = 1
    else:
        steps = max(min_steps, _cdiv(B, block_batch))
    return _round_up(_cdiv(B, steps), 8)


def pi_network_forward(x, params, action_upper_bounds, eps, *,
                       block_batch=1024, single_tile_max=1024,
                       num_tensorcores=1):
    """x: (B, state_dim) f32 -> (action (B, A) f32, log_prob (B,) f32).
    Set num_tensorcores=2 on v7x to shard the batch grid across both TCs."""
    B, S = x.shape
    A = eps.shape[-1]
    w1, b1, w2, b2, wmu, bmu, wls, bls = params
    L2 = w2.shape[1]

    # fused head padded to two 128-lane groups: mu -> cols 0:A, log_std -> 128:128+A
    wh = jnp.zeros((L2, _HEAD_LANES), jnp.float32)
    wh = wh.at[:, :A].set(wmu).at[:, 128:128 + A].set(wls)
    bh = jnp.zeros((1, _HEAD_LANES), jnp.float32)
    bh = bh.at[:, :A].set(bmu.reshape(1, A)).at[:, 128:128 + A].set(bls.reshape(1, A))

    # action bounds, lane-padded with zeros (zeroes padded action lanes exactly)
    bounds = jnp.zeros((1, _OUT_LANES), jnp.float32)
    bounds = bounds.at[:, :A].set(jnp.asarray(action_upper_bounds,
                                              jnp.float32).reshape(1, A))

    # batch tile / grid
    bt = _choose_batch_tile(B, block_batch=block_batch,
                            single_tile_max=single_tile_max,
                            num_tensorcores=num_tensorcores)
    steps = _cdiv(B, bt)
    B_pad = steps * bt

    # fused, lane-aligned input slab: x in lanes 0:S, eps in lanes S_lanes:S_lanes+A
    S_lanes = _round_up(max(S, 1), 128)
    xe = jnp.zeros((B_pad, S_lanes + 128), jnp.float32)
    xe = xe.at[:B, :S].set(x)
    xe = xe.at[:B, S_lanes:S_lanes + A].set(eps)

    kernel = partial(pi_kernel, state_dim=S, state_lanes=S_lanes, action_dim=A)

    def tiled(arr):            # batch-tiled operand
        return pl.BlockSpec((bt, arr.shape[1]), lambda i: (i, 0))

    def resident(arr):         # weights / biases / bounds: same block every step
        return pl.BlockSpec(arr.shape, lambda i: (0, 0))

    in_specs = [
        tiled(xe),
        resident(w1), resident(b1),
        resident(w2), resident(b2),
        resident(wh), resident(bh),
        resident(bounds),
    ]
    out_spec = pl.BlockSpec((bt, _OUT_LANES), lambda i: (i, 0))

    packed = pl.pallas_call(
        kernel,
        grid=(steps,),
        in_specs=in_specs,
        out_specs=out_spec,
        out_shape=jax.ShapeDtypeStruct((B_pad, _OUT_LANES), jnp.float32),
        compiler_params=pltpu.CompilerParams(
            dimension_semantics=("parallel",)),
    )(xe, w1, b1, w2, b2, wh, bh, bounds)

    action = packed[:B, :A]
    log_prob = packed[:B, A]
    return action, log_prob


def init_linear(key, fan_in, fan_out):
    """PyTorch nn.Linear default init: U(-1/sqrt(fan_in), 1/sqrt(fan_in))."""
    kw, kb = jax.random.split(key)
    bound = 1.0 / jnp.sqrt(float(fan_in))
    # stored pre-transposed: (in, out)
    w = jax.random.uniform(kw, (fan_in, fan_out), jnp.float32, -bound, bound)
    b = jax.random.uniform(kb, (1, fan_out), jnp.float32, -bound, bound)
    return w, b


def reference_forward(x, params, bounds_row, eps):
    """Pure-JAX reference implementing the original PyTorch math verbatim."""
    w1, b1, w2, b2, wmu, bmu, wls, bls = params
    h1 = jnp.maximum(x @ w1 + b1, 0.0)
    h2 = jnp.maximum(h1 @ w2 + b2, 0.0)
    mu = h2 @ wmu + bmu
    log_std = jnp.clip(h2 @ wls + bls, LOG_STD_MIN, LOG_STD_MAX)
    std = jnp.exp(log_std)
    out = mu + std * eps
    z = (out - mu) / std
    logp = jnp.sum(-0.5 * z * z - log_std - 0.5 * _LOG_2PI, axis=-1)
    softplus = jnp.logaddexp(-2.0 * out, 0.0)
    logp = logp - jnp.sum(2.0 * (_LOG_2 - out - softplus), axis=-1)
    act = jnp.tanh(out) * bounds_row
    return act, logp


if __name__ == "__main__":
    batch = 200          # small batch -> single grid step (bt = 208, 8 pad rows)
    state_dim = 16
    action_dim = 4
    l1_dim = 256
    l2_dim = 256

    root = jax.random.PRNGKey(0)
    k_x, k_eps, k1, k2, k3, k4, k_bounds = jax.random.split(root, 7)

    # deterministic synthetic parameters (no checkpoint load)
    w1, b1 = init_linear(k1, state_dim, l1_dim)
    w2, b2 = init_linear(k2, l1_dim, l2_dim)
    wmu, bmu = init_linear(k3, l2_dim, action_dim)
    wls, bls = init_linear(k4, l2_dim, action_dim)
    params = (w1, b1, w2, b2, wmu, bmu, wls, bls)

    # action upper bounds (action_dim,)
    action_upper_bounds = jax.random.uniform(
        k_bounds, (action_dim,), jnp.float32, 0.5, 2.0)

    x = jax.random.normal(k_x, (batch, state_dim), jnp.float32)
    # reparameterization noise for rsample (deterministic key)
    eps = jax.random.normal(k_eps, (batch, action_dim), jnp.float32)

    action, log_prob = pi_network_forward(x, params, action_upper_bounds, eps)
    jax.block_until_ready((action, log_prob))

    assert action.shape == (batch, action_dim)
    assert log_prob.shape == (batch,)
    assert bool(jnp.all(jnp.isfinite(action))) and bool(jnp.all(jnp.isfinite(log_prob)))

    # correctness vs. a pure-JAX reference of the original PyTorch formulation
    act_ref, logp_ref = reference_forward(x, params, action_upper_bounds[None, :], eps)
    assert bool(jnp.allclose(action, act_ref, rtol=1e-3, atol=1e-3))
    assert bool(jnp.allclose(log_prob, logp_ref, rtol=1e-3, atol=1e-3))

    # also exercise the multi-tile ("parallel" grid) path, e.g. v7x 2-TC config
    action2, log_prob2 = pi_network_forward(
        x, params, action_upper_bounds, eps, num_tensorcores=2)
    jax.block_until_ready((action2, log_prob2))
    assert bool(jnp.allclose(action2, act_ref, rtol=1e-3, atol=1e-3))
    assert bool(jnp.allclose(log_prob2, logp_ref, rtol=1e-3, atol=1e-3))

    print("KERNEL_OK")
</pallas_src>

<mosaic_0001>
module attributes {stable_mosaic.version = 11 : i64} {
  func.func @pi_kernel(%arg0: i32, %arg1: memref<200x256xf32, #tpu.memory_space<vmem>>, %arg2: memref<16x256xf32, #tpu.memory_space<vmem>>, %arg3: memref<1x256xf32, #tpu.memory_space<vmem>>, %arg4: memref<256x256xf32, #tpu.memory_space<vmem>>, %arg5: memref<1x256xf32, #tpu.memory_space<vmem>>, %arg6: memref<256x256xf32, #tpu.memory_space<vmem>>, %arg7: memref<1x256xf32, #tpu.memory_space<vmem>>, %arg8: memref<1x128xf32, #tpu.memory_space<vmem>>, %arg9: memref<200x128xf32, #tpu.memory_space<vmem>>) attributes {dimension_semantics = [#tpu.dimension_semantics<parallel>], iteration_bounds = array<i64: 1>, scalar_prefetch = 0 : i64, scratch_operands = 0 : i64, tpu.core_type = #tpu.core_type<tc>, window_params = [{transform_indices = @transform_0, window_bounds = array<i64: 200, 256>}, {pipeline_mode = #tpu.pipeline_mode<synchronous>, transform_indices = @transform_1, window_bounds = array<i64: 16, 256>}, {pipeline_mode = #tpu.pipeline_mode<synchronous>, transform_indices = @transform_2, window_bounds = array<i64: 1, 256>}, {pipeline_mode = #tpu.pipeline_mode<synchronous>, transform_indices = @transform_3, window_bounds = array<i64: 256, 256>}, {pipeline_mode = #tpu.pipeline_mode<synchronous>, transform_indices = @transform_4, window_bounds = array<i64: 1, 256>}, {pipeline_mode = #tpu.pipeline_mode<synchronous>, transform_indices = @transform_5, window_bounds = array<i64: 256, 256>}, {pipeline_mode = #tpu.pipeline_mode<synchronous>, transform_indices = @transform_6, window_bounds = array<i64: 1, 256>}, {pipeline_mode = #tpu.pipeline_mode<synchronous>, transform_indices = @transform_7, window_bounds = array<i64: 1, 128>}, {transform_indices = @transform_8, window_bounds = array<i64: 200, 128>}]} {
    %c0 = arith.constant 0 : index
    %c0_0 = arith.constant 0 : index
    %0 = vector.load %arg1[%c0, %c0_0] : memref<200x256xf32, #tpu.memory_space<vmem>>, vector<200x16xf32>
    %c0_1 = arith.constant 0 : index
    %c128 = arith.constant 128 : index
    %1 = vector.load %arg1[%c0_1, %c128] : memref<200x256xf32, #tpu.memory_space<vmem>>, vector<200x128xf32>
    %c0_2 = arith.constant 0 : index
    %c0_3 = arith.constant 0 : index
    %2 = vector.load %arg2[%c0_2, %c0_3] : memref<16x256xf32, #tpu.memory_space<vmem>>, vector<16x256xf32>
    %cst = arith.constant dense<0.000000e+00> : vector<200x256xf32>
    %3 = tpu.matmul %0, %2, %cst {dimension_numbers = #tpu.dot_dimension_numbers<[1], [0], [0], [1], [0, 0, 1, 1], [], []>} : vector<200x16xf32>, vector<16x256xf32>, vector<200x256xf32> -> vector<200x256xf32>
    %c0_4 = arith.constant 0 : index
    %c0_5 = arith.constant 0 : index
    %4 = vector.load %arg3[%c0_4, %c0_5] : memref<1x256xf32, #tpu.memory_space<vmem>>, vector<1x256xf32>
    %5 = vector.broadcast %4 : vector<1x256xf32> to vector<200x256xf32>
    %6 = arith.addf %3, %5 : vector<200x256xf32>
    %cst_6 = arith.constant 0.000000e+00 : f32
    %7 = vector.broadcast %cst_6 : f32 to vector<200x256xf32>
    %8 = arith.maximumf %6, %7 : vector<200x256xf32>
    %c0_7 = arith.constant 0 : index
    %c0_8 = arith.constant 0 : index
    %9 = vector.load %arg4[%c0_7, %c0_8] : memref<256x256xf32, #tpu.memory_space<vmem>>, vector<256x256xf32>
    %cst_9 = arith.constant dense<0.000000e+00> : vector<200x256xf32>
    %10 = tpu.matmul %8, %9, %cst_9 {dimension_numbers = #tpu.dot_dimension_numbers<[1], [0], [0], [1], [0, 0, 1, 1], [], []>} : vector<200x256xf32>, vector<256x256xf32>, vector<200x256xf32> -> vector<200x256xf32>
    %c0_10 = arith.constant 0 : index
    %c0_11 = arith.constant 0 : index
    %11 = vector.load %arg5[%c0_10, %c0_11] : memref<1x256xf32, #tpu.memory_space<vmem>>, vector<1x256xf32>
    %12 = vector.broadcast %11 : vector<1x256xf32> to vector<200x256xf32>
    %13 = arith.addf %10, %12 : vector<200x256xf32>
    %cst_12 = arith.constant 0.000000e+00 : f32
    %14 = vector.broadcast %cst_12 : f32 to vector<200x256xf32>
    %15 = arith.maximumf %13, %14 : vector<200x256xf32>
    %c0_13 = arith.constant 0 : index
    %c0_14 = arith.constant 0 : index
    %16 = vector.load %arg6[%c0_13, %c0_14] : memref<256x256xf32, #tpu.memory_space<vmem>>, vector<256x256xf32>
    %cst_15 = arith.constant dense<0.000000e+00> : vector<200x256xf32>
    %17 = tpu.matmul %15, %16, %cst_15 {dimension_numbers = #tpu.dot_dimension_numbers<[1], [0], [0], [1], [0, 0, 1, 1], [], []>} : vector<200x256xf32>, vector<256x256xf32>, vector<200x256xf32> -> vector<200x256xf32>
    %c0_16 = arith.constant 0 : index
    %c0_17 = arith.constant 0 : index
    %18 = vector.load %arg7[%c0_16, %c0_17] : memref<1x256xf32, #tpu.memory_space<vmem>>, vector<1x256xf32>
    %19 = vector.broadcast %18 : vector<1x256xf32> to vector<200x256xf32>
    %20 = arith.addf %17, %19 : vector<200x256xf32>
    %21 = vector.extract_strided_slice %20 {offsets = [0, 0], sizes = [200, 128], strides = [1, 1]} : vector<200x256xf32> to vector<200x128xf32>
    %22 = vector.extract_strided_slice %20 {offsets = [0, 128], sizes = [200, 128], strides = [1, 1]} : vector<200x256xf32> to vector<200x128xf32>
    %cst_18 = arith.constant -2.000000e+01 : f32
    %cst_19 = arith.constant 2.000000e+00 : f32
    %23 = vector.broadcast %cst_18 : f32 to vector<200x128xf32>
    %24 = arith.maximumf %23, %22 : vector<200x128xf32>
    %25 = vector.broadcast %cst_19 : f32 to vector<200x128xf32>
    %26 = arith.minimumf %25, %24 : vector<200x128xf32>
    %27 = math.exp %26 : vector<200x128xf32>
    %28 = arith.mulf %27, %1 : vector<200x128xf32>
    %29 = arith.addf %21, %28 : vector<200x128xf32>
    %cst_20 = arith.constant -5.000000e-01 : f32
    %30 = vector.broadcast %cst_20 : f32 to vector<200x128xf32>
    %31 = arith.mulf %30, %1 : vector<200x128xf32>
    %32 = arith.mulf %31, %1 : vector<200x128xf32>
    %33 = arith.subf %32, %26 : vector<200x128xf32>
    %cst_21 = arith.constant dense<0.000000e+00> : vector<200xf32>
    %34 = vector.multi_reduction <add>, %33, %cst_21 [1] : vector<200x128xf32> to vector<200xf32>
    %35 = vector.shape_cast %34 : vector<200xf32> to vector<200x1xf32>
    %cst_22 = arith.constant 3.67575407 : f32
    %36 = vector.broadcast %cst_22 : f32 to vector<200x1xf32>
    %37 = arith.subf %35, %36 : vector<200x1xf32>
    %cst_23 = arith.constant -2.000000e+00 : f32
    %38 = vector.broadcast %cst_23 : f32 to vector<200x128xf32>
    %39 = arith.mulf %38, %29 : vector<200x128xf32>
    %cst_24 = arith.constant 0.000000e+00 : f32
    %40 = vector.broadcast %cst_24 : f32 to vector<200x128xf32>
    %41 = arith.maximumf %39, %40 : vector<200x128xf32>
    %42 = math.absf %39 : vector<200x128xf32>
    %cst_25 = arith.constant 0.000000e+00 : f32
    %43 = vector.broadcast %cst_25 : f32 to vector<200x128xf32>
    %44 = arith.subf %43, %42 : vector<200x128xf32>
    %45 = math.exp %44 : vector<200x128xf32>
    %46 = math.log1p %45 : vector<200x128xf32>
    %47 = arith.addf %41, %46 : vector<200x128xf32>
    %cst_26 = arith.constant 0.693147182 : f32
    %48 = vector.broadcast %cst_26 : f32 to vector<200x128xf32>
    %49 = arith.subf %48, %29 : vector<200x128xf32>
    %50 = arith.subf %49, %47 : vector<200x128xf32>
    %cst_27 = arith.constant 2.000000e+00 : f32
    %51 = vector.broadcast %cst_27 : f32 to vector<200x128xf32>
    %52 = arith.mulf %51, %50 : vector<200x128xf32>
    %cst_28 = arith.constant dense<0.000000e+00> : vector<200xf32>
    %53 = vector.multi_reduction <add>, %52, %cst_28 [1] : vector<200x128xf32> to vector<200xf32>
    %54 = vector.shape_cast %53 : vector<200xf32> to vector<200x1xf32>
    %55 = arith.subf %37, %54 : vector<200x1xf32>
    %56 = math.tanh %29 : vector<200x128xf32>
    %c0_29 = arith.constant 0 : index
    %c0_30 = arith.constant 0 : index
    %57 = vector.load %arg8[%c0_29, %c0_30] : memref<1x128xf32, #tpu.memory_space<vmem>>, vector<1x128xf32>
    %58 = vector.broadcast %57 : vector<1x128xf32> to vector<200x128xf32>
    %59 = arith.mulf %56, %58 : vector<200x128xf32>
    %60 = tpu.iota {dimensions = array<i32: 1>} : vector<200x128xi32>
    %c4_i32 = arith.constant 4 : i32
    %61 = vector.broadcast %c4_i32 : i32 to vector<200x128xi32>
    %62 = arith.cmpi eq, %60, %61 : vector<200x128xi32>
    %63 = vector.shape_cast %55 : vector<200x1xf32> to vector<200x1xf32>
    %64 = vector.broadcast %63 : vector<200x1xf32> to vector<200x128xf32>
    %65 = arith.select %62, %64, %59 : vector<200x128xi1>, vector<200x128xf32>
    %c0_31 = arith.constant 0 : index
    %c0_32 = arith.constant 0 : index
    %66 = vector.load %arg9[%c0_31, %c0_32] : memref<200x128xf32, #tpu.memory_space<vmem>>, vector<200x128xf32>
    tpu.vector_store %arg9[%c0_31, %c0_32], %65 {strides = array<i32>} : memref<200x128xf32, #tpu.memory_space<vmem>>, vector<200x128xf32>,
    return
  }
  func.func @transform_0(%arg0: i32) -> (i32, i32) {
    %c0_i32 = arith.constant 0 : i32
    %c0_i32_0 = arith.constant 0 : i32
    return %arg0, %c0_i32 : i32, i32
  }
  func.func @transform_1(%arg0: i32) -> (i32, i32) {
    %c0_i32 = arith.constant 0 : i32
    %c0_i32_0 = arith.constant 0 : i32
    %c0_i32_1 = arith.constant 0 : i32
    return %c0_i32, %c0_i32_0 : i32, i32
  }
  func.func @transform_2(%arg0: i32) -> (i32, i32) {
    %c0_i32 = arith.constant 0 : i32
    %c0_i32_0 = arith.constant 0 : i32
    %c0_i32_1 = arith.constant 0 : i32
    return %c0_i32, %c0_i32_0 : i32, i32
  }
  func.func @transform_3(%arg0: i32) -> (i32, i32) {
    %c0_i32 = arith.constant 0 : i32
    %c0_i32_0 = arith.constant 0 : i32
    %c0_i32_1 = arith.constant 0 : i32
    return %c0_i32, %c0_i32_0 : i32, i32
  }
  func.func @transform_4(%arg0: i32) -> (i32, i32) {
    %c0_i32 = arith.constant 0 : i32
    %c0_i32_0 = arith.constant 0 : i32
    %c0_i32_1 = arith.constant 0 : i32
    return %c0_i32, %c0_i32_0 : i32, i32
  }
  func.func @transform_5(%arg0: i32) -> (i32, i32) {
    %c0_i32 = arith.constant 0 : i32
    %c0_i32_0 = arith.constant 0 : i32
    %c0_i32_1 = arith.constant 0 : i32
    return %c0_i32, %c0_i32_0 : i32, i32
  }
  func.func @transform_6(%arg0: i32) -> (i32, i32) {
    %c0_i32 = arith.constant 0 : i32
    %c0_i32_0 = arith.constant 0 : i32
    %c0_i32_1 = arith.constant 0 : i32
    return %c0_i32, %c0_i32_0 : i32, i32
  }
  func.func @transform_7(%arg0: i32) -> (i32, i32) {
    %c0_i32 = arith.constant 0 : i32
    %c0_i32_0 = arith.constant 0 : i32
    %c0_i32_1 = arith.constant 0 : i32
    return %c0_i32, %c0_i32_0 : i32, i32
  }
  func.func @transform_8(%arg0: i32) -> (i32, i32) {
    %c0_i32 = arith.constant 0 : i32
    %c0_i32_0 = arith.constant 0 : i32
    return %arg0, %c0_i32 : i32, i32
  }
}

</mosaic_0001>

<llo_original>
// kernel: tpu_custom_call.1
$region0: #{tpu_custom_call.1}
  #allocation0 [shape = 'u32[]', space=smem, size = 0x4, offset = 0x4, fixed_abs, tag = 'smem constant byte address 0x4 - core index']
  #allocation1 [shape = 'u32[144,128]{1,0:T(1,128)}', space=vmem, size = 0x12000, scoped, tag = 'internal scratch']
  %s0 = inlined_call_operand.hbm [shape: f32[200,256], index: 0, kind: input, shape index: {}]
  %s1 = inlined_call_operand.hbm [shape: f32[16,256], index: 1, kind: input, shape index: {}]
  %s2 = inlined_call_operand.vmem [shape: f32[1,256], index: 2, kind: input, shape index: {}]
  %s3 = inlined_call_operand.hbm [shape: f32[256,256], index: 3, kind: input, shape index: {}]
  %s4 = inlined_call_operand.vmem [shape: f32[1,256], index: 4, kind: input, shape index: {}]
  %s5 = inlined_call_operand.hbm [shape: f32[256,256], index: 5, kind: input, shape index: {}]
  %s6 = inlined_call_operand.vmem [shape: f32[1,256], index: 6, kind: input, shape index: {}]
  %s7 = inlined_call_operand.vmem [shape: f32[1,128], index: 7, kind: input, shape index: {}]
  %s8 = inlined_call_operand.hbm [shape: f32[200,128], index: 8, kind: output, shape index: {}]
  %s9 = sld [smem:[#allocation0]]
  $region58: #{tpu_custom_call.1} parent=0
    _
  %s11 = ssub.s32 1, %s9
  %s12 = scalar_select 0, %s11, %s9
  $region1: #{tpu_custom_call.1} parent=0
    #allocation2 [shape = 'u8[204800]{0}', space=vmem, size = 0x32000, scoped, tag = 'input window, operand 0, single buffered']
    #allocation3 [shape = 's32[1]{0}', space=sflag, size = 0x4, scoped, tag = 'scoped memory for tpu_custom_call.1']
    #allocation4 [shape = 's32[1]{0}', space=sflag, size = 0x4, scoped, tag = 'scoped memory for tpu_custom_call.1']
    #allocation5 [shape = 'u8[16384]{0}', space=vmem, size = 0x4000, scoped, tag = 'input window, operand 1, single buffered']
    #allocation6 [shape = 's32[1]{0}', space=sflag, size = 0x4, scoped, tag = 'scoped memory for tpu_custom_call.1']
    #allocation7 [shape = 'u8[262144]{0}', space=vmem, size = 0x40000, scoped, tag = 'input window, operand 3, single buffered']
    #allocation8 [shape = 'u8[262144]{0}', space=vmem, size = 0x40000, scoped, tag = 'input window, operand 5, single buffered']
    #allocation9 [shape = 's32[1]{0}', space=sflag, size = 0x4, scoped, tag = 'scoped memory for tpu_custom_call.1']
    #allocation10 [shape = 'u8[102400]{0}', space=vmem, size = 0x19000, scoped, tag = 'output window, operand 0, single buffered']
    %13 = vsyncpa [#allocation3], 0
    %14 = vsyncpa [#allocation6], 0
    %15 = vsyncpa [#allocation9], 0
    %16 = vsyncpa [#allocation4], 0
    // Predicated region
    $region2: #{tpu_custom_call.1} parent=1 // pred_check
      _
    $region3: #{tpu_custom_call.1} parent=1 // pred_check_branch
      %18 = sbr.rel (0) target = $region5
    $region4: #{tpu_custom_call.1} parent=1 // pred_region
      %s20 = ssub.s32 6400, 6400
      %21 = vsyncadd [#allocation3], %s20
      %s22 = sshll.u32 [#allocation2], 4
      %s23 = int_to_ptr.vmem [resolvable:$true] %s22
      %28 = dma.hbm_to_vmem [thread:$0]  %s0, 6400, %s23, [#allocation3], 256, 256, 16
    $region5: #{tpu_custom_call.1} parent=1 // pred_fallthru
      _
    // Predicated region
    $region6: #{tpu_custom_call.1} parent=1 // pred_check
      _
    $region7: #{tpu_custom_call.1} parent=1 // pred_check_branch
      %30 = sbr.rel (0) target = $region9
    $region8: #{tpu_custom_call.1} parent=1 // pred_region
      %s32 = ssub.s32 512, 512
      %33 = vsyncadd [#allocation6], %s32
      %s34 = sshll.u32 [#allocation5], 4
      %s35 = int_to_ptr.vmem [resolvable:$true] %s34
      %40 = dma.hbm_to_vmem [thread:$0]  %s1, 512, %s35, [#allocation6], 256, 256, 16
    $region9: #{tpu_custom_call.1} parent=1 // pred_fallthru
      _
    // Predicated region
    $region10: #{tpu_custom_call.1} parent=1 // pred_check
      _
    $region11: #{tpu_custom_call.1} parent=1 // pred_check_branch
      %42 = sbr.rel (0) target = $region13
    $region12: #{tpu_custom_call.1} parent=1 // pred_region
      _
    $region13: #{tpu_custom_call.1} parent=1 // pred_fallthru
      _
    // Predicated region
    $region14: #{tpu_custom_call.1} parent=1 // pred_check
      _
    $region15: #{tpu_custom_call.1} parent=1 // pred_check_branch
      %44 = sbr.rel (0) target = $region17
    $region16: #{tpu_custom_call.1} parent=1 // pred_region
      %s46 = ssub.s32 8192, 8192
      %47 = vsyncadd [#allocation6], %s46
      %s48 = sshll.u32 [#allocation7], 4
      %s49 = int_to_ptr.vmem [resolvable:$true] %s48
      %54 = dma.hbm_to_vmem [thread:$0]  %s3, 8192, %s49, [#allocation6], 256, 256, 16
    $region17: #{tpu_custom_call.1} parent=1 // pred_fallthru
      _
    // Predicated region
    $region18: #{tpu_custom_call.1} parent=1 // pred_check
      _
    $region19: #{tpu_custom_call.1} parent=1 // pred_check_branch
      %56 = sbr.rel (0) target = $region21
    $region20: #{tpu_custom_call.1} parent=1 // pred_region
      _
    $region21: #{tpu_custom_call.1} parent=1 // pred_fallthru
      _
    // Predicated region
    $region22: #{tpu_custom_call.1} parent=1 // pred_check
      _
    $region23: #{tpu_custom_call.1} parent=1 // pred_check_branch
      %58 = sbr.rel (0) target = $region25
    $region24: #{tpu_custom_call.1} parent=1 // pred_region
      %s60 = ssub.s32 8192, 8192
      %61 = vsyncadd [#allocation9], %s60
      %s62 = sshll.u32 [#allocation8], 4
      %s63 = int_to_ptr.vmem [resolvable:$true] %s62
      %68 = dma.hbm_to_vmem [thread:$0]  %s5, 8192, %s63, [#allocation9], 256, 256, 16
    $region25: #{tpu_custom_call.1} parent=1 // pred_fallthru
      _
    // Predicated region
    $region26: #{tpu_custom_call.1} parent=1 // pred_check
      _
    $region27: #{tpu_custom_call.1} parent=1 // pred_check_branch
      %70 = sbr.rel (0) target = $region29
    $region28: #{tpu_custom_call.1} parent=1 // pred_region
      _
    $region29: #{tpu_custom_call.1} parent=1 // pred_fallthru
      _
    // Predicated region
    $region30: #{tpu_custom_call.1} parent=1 // pred_check
      _
    $region31: #{tpu_custom_call.1} parent=1 // pred_check_branch
      %72 = sbr.rel (0) target = $region33
    $region32: #{tpu_custom_call.1} parent=1 // pred_region
      _
    $region33: #{tpu_custom_call.1} parent=1 // pred_fallthru
      _
    // Predicated region
    $region34: #{tpu_custom_call.1} parent=1 // pred_check
      _
    $region35: #{tpu_custom_call.1} parent=1 // pred_check_branch
      %74 = sbr.rel (0) target = $region37
    $region36: #{tpu_custom_call.1} parent=1 // pred_region
      %75 = dma.done [#allocation3], 6400
    $region37: #{tpu_custom_call.1} parent=1 // pred_fallthru
      _
    // Predicated region
    $region38: #{tpu_custom_call.1} parent=1 // pred_check
      _
    $region39: #{tpu_custom_call.1} parent=1 // pred_check_branch
      %77 = sbr.rel (0) target = $region41
    $region40: #{tpu_custom_call.1} parent=1 // pred_region
      %78 = dma.done [#allocation6], 512
    $region41: #{tpu_custom_call.1} parent=1 // pred_fallthru
      _
    // Predicated region
    $region42: #{tpu_custom_call.1} parent=1 // pred_check
      _
    $region43: #{tpu_custom_call.1} parent=1 // pred_check_branch
      %80 = sbr.rel (0) target = $region45
    $region44: #{tpu_custom_call.1} parent=1 // pred_region
      %81 = dma.done [#allocation6], 8192
    $region45: #{tpu_custom_call.1} parent=1 // pred_fallthru
      _
    // Predicated region
    $region46: #{tpu_custom_call.1} parent=1 // pred_check
      _
    $region47: #{tpu_custom_call.1} parent=1 // pred_check_branch
      %83 = sbr.rel (0) target = $region49
    $region48: #{tpu_custom_call.1} parent=1 // pred_region
      %84 = dma.done [#allocation9], 8192
    $region49: #{tpu_custom_call.1} parent=1 // pred_fallthru
      _
    %v85 = vld [vmem:[#allocation2] sm:$0xff]
    %v86 = vld [vmem:[#allocation2 + $0x10] sm:$0xff]
    %v87 = vld [vmem:[#allocation2 + $0x20] sm:$0xff]
    %v88 = vld [vmem:[#allocation2 + $0x30] sm:$0xff]
    %v89 = vld [vmem:[#allocation2 + $0x40] sm:$0xff]
    %v90 = vld [vmem:[#allocation2 + $0x50] sm:$0xff]
    %v91 = vld [vmem:[#allocation2 + $0x60] sm:$0xff]
    %v92 = vld [vmem:[#allocation2 + $0x70] sm:$0xff]
    %v93 = vld [vmem:[#allocation2 + $0x80] sm:$0xff]
    %v94 = vld [vmem:[#allocation2 + $0x90] sm:$0xff]
    %v95 = vld [vmem:[#allocation2 + $0xa0] sm:$0xff]
    %v96 = vld [vmem:[#allocation2 + $0xb0] sm:$0xff]
    %v97 = vld [vmem:[#allocation2 + $0xc0] sm:$0xff]
    %v98 = vld [vmem:[#allocation2 + $0xd0] sm:$0xff]
    %v99 = vld [vmem:[#allocation2 + $0xe0] sm:$0xff]
    %v100 = vld [vmem:[#allocation2 + $0xf0] sm:$0xff]
    %v101 = vld [vmem:[#allocation2 + $0x100] sm:$0xff]
    %v102 = vld [vmem:[#allocation2 + $0x110] sm:$0xff]
    %v103 = vld [vmem:[#allocation2 + $0x120] sm:$0xff]
    %v104 = vld [vmem:[#allocation2 + $0x130] sm:$0xff]
    %v105 = vld [vmem:[#allocation2 + $0x140] sm:$0xff]
    %v106 = vld [vmem:[#allocation2 + $0x150] sm:$0xff]
    %v107 = vld [vmem:[#allocation2 + $0x160] sm:$0xff]
    %v108 = vld [vmem:[#allocation2 + $0x170] sm:$0xff]
    %v109 = vld [vmem:[#allocation2 + $0x180] sm:$0xff]
    %v110 = vld [vmem:[#allocation2 + $0x8] sm:$0xff]
    %v111 = vld [vmem:[#allocation2 + $0x18] sm:$0xff]
    %v112 = vld [vmem:[#allocation2 + $0x28] sm:$0xff]
    %v113 = vld [vmem:[#allocation2 + $0x38] sm:$0xff]
    %v114 = vld [vmem:[#allocation2 + $0x48] sm:$0xff]
    %v115 = vld [vmem:[#allocation2 + $0x58] sm:$0xff]
    %v116 = vld [vmem:[#allocation2 + $0x68] sm:$0xff]
    %v117 = vld [vmem:[#allocation2 + $0x78] sm:$0xff]
    %v118 = vld [vmem:[#allocation2 + $0x88] sm:$0xff]
    %v119 = vld [vmem:[#allocation2 + $0x98] sm:$0xff]
    %v120 = vld [vmem:[#allocation2 + $0xa8] sm:$0xff]
    %v121 = vld [vmem:[#allocation2 + $0xb8] sm:$0xff]
    %v122 = vld [vmem:[#allocation2 + $0xc8] sm:$0xff]
    %v123 = vld [vmem:[#allocation2 + $0xd8] sm:$0xff]
    %v124 = vld [vmem:[#allocation2 + $0xe8] sm:$0xff]
    %v125 = vld [vmem:[#allocation2 + $0xf8] sm:$0xff]
    %v126 = vld [vmem:[#allocation2 + $0x108] sm:$0xff]
    %v127 = vld [vmem:[#allocation2 + $0x118] sm:$0xff]
    %v128 = vld [vmem:[#allocation2 + $0x128] sm:$0xff]
    %v129 = vld [vmem:[#allocation2 + $0x138] sm:$0xff]
    %v130 = vld [vmem:[#allocation2 + $0x148] sm:$0xff]
    %v131 = vld [vmem:[#allocation2 + $0x158] sm:$0xff]
    %v132 = vld [vmem:[#allocation2 + $0x168] sm:$0xff]
    %v133 = vld [vmem:[#allocation2 + $0x178] sm:$0xff]
    %v134 = vld [vmem:[#allocation2 + $0x188] sm:$0xff]
    %v135 = vld [vmem:[#allocation5] sm:$0xff]
    %v136 = vld [vmem:[#allocation5 + $0x8] sm:$0xff]
    %v137 = vld [vmem:[#allocation5 + $0x10] sm:$0xff]
    %v138 = vld [vmem:[#allocation5 + $0x18] sm:$0xff]
    %v139 = vld [vmem:[%s2] sm:$0x3]
    %v141 = vlaneseq
    %v142 = vshrl.u32 %v141, 7
    %v143 = vsub.s32 0, %v142
    %v144 = vrot.slane %v139, %v143
    %v145 = vlaneseq
    %v146 = vshrl.u32 %v145, 7
    %v147 = vsub.s32 1, %v146
    %v148 = vrot.slane %v139, %v147
    %vm151 = vcmask 130048
    %v153 = vsel %vm151, %v85, 0
    %v156 = vsel %vm151, %v86, 0
    %v159 = vsel %vm151, %v87, 0
    %v162 = vsel %vm151, %v88, 0
    %v165 = vsel %vm151, %v89, 0
    %v168 = vsel %vm151, %v90, 0
    %v171 = vsel %vm151, %v91, 0
    %v174 = vsel %vm151, %v92, 0
    %v177 = vsel %vm151, %v93, 0
    %v180 = vsel %vm151, %v94, 0
    %v183 = vsel %vm151, %v95, 0
    %v186 = vsel %vm151, %v96, 0
    %v189 = vsel %vm151, %v97, 0
    %v192 = vsel %vm151, %v98, 0
    %v195 = vsel %vm151, %v99, 0
    %v198 = vsel %vm151, %v100, 0
    %v201 = vsel %vm151, %v101, 0
    %v204 = vsel %vm151, %v102, 0
    %v207 = vsel %vm151, %v103, 0
    %v210 = vsel %vm151, %v104, 0
    %v213 = vsel %vm151, %v105, 0
    %v216 = vsel %vm151, %v106, 0
    %v219 = vsel %vm151, %v107, 0
    %v222 = vsel %vm151, %v108, 0
    %v225 = vsel %vm151, %v109, 0
    %227 = vmatprep.subr.mxu0 0.0
    %228 = vmatpush1.msra.mxu0 0.0
    %229 = vmatprep.subr.mxu0 0.0
    %230 = vmatpush1.msra.mxu0 0.0
    %231 = vmatprep.subr.mxu0 0.0
    %232 = vmatpush1.msra.mxu0 0.0
    %233 = vmatprep.subr.mxu0 0.0
    %234 = vmatpush1.msra.mxu0 0.0
    %235 = vmatprep.subr.mxu0 0.0
    %236 = vmatpush1.msra.mxu0 0.0
    %237 = vmatprep.subr.mxu0 0.0
    %238 = vmatpush1.msra.mxu0 0.0
    %239 = vmatprep.subr.mxu0 0.0
    %240 = vmatpush1.msra.mxu0 0.0
    %241 = vmatprep.subr.mxu0 0.0
    %242 = vmatpush1.msra.mxu0 0.0
    %243 = vmatprep.subr.mxu0 0.0
    %244 = vmatpush1.msra.mxu0 0.0
    %245 = vmatprep.subr.mxu0 0.0
    %246 = vmatpush1.msra.mxu0 0.0
    %247 = vmatprep.subr.mxu0 0.0
    %248 = vmatpush1.msra.mxu0 0.0
    %249 = vmatprep.subr.mxu0 0.0
    %250 = vmatpush1.msra.mxu0 0.0
    %251 = vmatprep.subr.mxu0 0.0
    %252 = vmatpush1.msra.mxu0 0.0
    %253 = vmatprep.subr.mxu0 0.0
    %254 = vmatpush1.msra.mxu0 0.0
    %255 = vmatprep.subr.mxu0 %v138
    %256 = vmatpush1.msra.mxu0 %v137
    %257 = vmatprep.subr.mxu0 %v136
    %258 = vmatpush1.msra.mxu0 %v135
    %259 = vmatprep.subr.mxu0 0.0
    %260 = vmatpush2.msra.mxu0 0.0
    %261 = vmatprep.subr.mxu0 0.0
    %262 = vmatpush2.msra.mxu0 0.0
    %263 = vmatprep.subr.mxu0 0.0
    %264 = vmatpush2.msra.mxu0 0.0
    %265 = vmatprep.subr.mxu0 0.0
    %266 = vmatpush2.msra.mxu0 0.0
    %267 = vmatprep.subr.mxu0 0.0
    %268 = vmatpush2.msra.mxu0 0.0
    %269 = vmatprep.subr.mxu0 0.0
    %270 = vmatpush2.msra.mxu0 0.0
    %271 = vmatprep.subr.mxu0 0.0
    %272 = vmatpush2.msra.mxu0 0.0
    %273 = vmatprep.subr.mxu0 0.0
    %274 = vmatpush2.msra.mxu0 0.0
    %275 = vmatprep.subr.mxu0 0.0
    %276 = vmatpush2.msra.mxu0 0.0
    %277 = vmatprep.subr.mxu0 0.0
    %278 = vmatpush2.msra.mxu0 0.0
    %279 = vmatprep.subr.mxu0 0.0
    %280 = vmatpush2.msra.mxu0 0.0
    %281 = vmatprep.subr.mxu0 0.0
    %282 = vmatpush2.msra.mxu0 0.0
    %283 = vmatprep.subr.mxu0 0.0
    %284 = vmatpush2.msra.mxu0 0.0
    %285 = vmatprep.subr.mxu0 0.0
    %286 = vmatpush2.msra.mxu0 0.0
    %287 = vmatprep.subr.mxu0 0.0
    %288 = vmatpush2.msra.mxu0 0.0
    %289 = vmatprep.subr.mxu0 0.0
    %290 = vmatpush2.msra.mxu0 0.0
    %291 = vmatprep.mubr.f32.mxu0 0.0
    %292 = vmatmul.mubr.f32.gmra.mxu0 %v153
    %v293 = vpop.f32.mrf.mxu0
    %v294 = vadd.f32 %v144, %v293
    %v295 = vpop.f32.mrf.mxu0
    %v296 = vadd.f32 %v148, %v295
    %297 = vmatprep.mubr.f32.mxu0 0.0
    %298 = vmatmul.mubr.f32.gmra.mxu0 %v156
    %v299 = vpop.f32.mrf.mxu0
    %v300 = vadd.f32 %v144, %v299
    %v301 = vpop.f32.mrf.mxu0
    %v302 = vadd.f32 %v148, %v301
    %303 = vmatprep.mubr.f32.mxu0 0.0
    %304 = vmatmul.mubr.f32.gmra.mxu0 %v159
    %v305 = vpop.f32.mrf.mxu0
    %v306 = vadd.f32 %v144, %v305
    %v307 = vpop.f32.mrf.mxu0
    %v308 = vadd.f32 %v148, %v307
    %309 = vmatprep.mubr.f32.mxu0 0.0
    %310 = vmatmul.mubr.f32.gmra.mxu0 %v162
    %v311 = vpop.f32.mrf.mxu0
    %v312 = vadd.f32 %v144, %v311
    %v313 = vpop.f32.mrf.mxu0
    %v314 = vadd.f32 %v148, %v313
    %315 = vmatprep.mubr.f32.mxu0 0.0
    %316 = vmatmul.mubr.f32.gmra.mxu0 %v165
    %v317 = vpop.f32.mrf.mxu0
    %v318 = vadd.f32 %v144, %v317
    %v319 = vpop.f32.mrf.mxu0
    %v320 = vadd.f32 %v148, %v319
    %321 = vmatprep.mubr.f32.mxu0 0.0
    %322 = vmatmul.mubr.f32.gmra.mxu0 %v168
    %v323 = vpop.f32.mrf.mxu0
    %v324 = vadd.f32 %v144, %v323
    %v325 = vpop.f32.mrf.mxu0
    %v326 = vadd.f32 %v148, %v325
    %327 = vmatprep.mubr.f32.mxu0 0.0
    %328 = vmatmul.mubr.f32.gmra.mxu0 %v171
    %v329 = vpop.f32.mrf.mxu0
    %v330 = vadd.f32 %v144, %v329
    %v331 = vpop.f32.mrf.mxu0
    %v332 = vadd.f32 %v148, %v331
    %333 = vmatprep.mubr.f32.mxu0 0.0
    %334 = vmatmul.mubr.f32.gmra.mxu0 %v174
    %v335 = vpop.f32.mrf.mxu0
    %v336 = vadd.f32 %v144, %v335
    %v337 = vpop.f32.mrf.mxu0
    %v338 = vadd.f32 %v148, %v337
    %339 = vmatprep.mubr.f32.mxu0 0.0
    %340 = vmatmul.mubr.f32.gmra.mxu0 %v177
    %v341 = vpop.f32.mrf.mxu0
    %v342 = vadd.f32 %v144, %v341
    %v343 = vpop.f32.mrf.mxu0
    %v344 = vadd.f32 %v148, %v343
    %345 = vmatprep.mubr.f32.mxu0 0.0
    %346 = vmatmul.mubr.f32.gmra.mxu0 %v180
    %v347 = vpop.f32.mrf.mxu0
    %v348 = vadd.f32 %v144, %v347
    %v349 = vpop.f32.mrf.mxu0
    %v350 = vadd.f32 %v148, %v349
    %351 = vmatprep.mubr.f32.mxu0 0.0
    %352 = vmatmul.mubr.f32.gmra.mxu0 %v183
    %v353 = vpop.f32.mrf.mxu0
    %v354 = vadd.f32 %v144, %v353
    %v355 = vpop.f32.mrf.mxu0
    %v356 = vadd.f32 %v148, %v355
    %357 = vmatprep.mubr.f32.mxu0 0.0
    %358 = vmatmul.mubr.f32.gmra.mxu0 %v186
    %v359 = vpop.f32.mrf.mxu0
    %v360 = vadd.f32 %v144, %v359
    %v361 = vpop.f32.mrf.mxu0
    %v362 = vadd.f32 %v148, %v361
    %363 = vmatprep.mubr.f32.mxu0 0.0
    %364 = vmatmul.mubr.f32.gmra.mxu0 %v189
    %v365 = vpop.f32.mrf.mxu0
    %v366 = vadd.f32 %v144, %v365
    %v367 = vpop.f32.mrf.mxu0
    %v368 = vadd.f32 %v148, %v367
    %369 = vmatprep.mubr.f32.mxu0 0.0
    %370 = vmatmul.mubr.f32.gmra.mxu0 %v192
    %v371 = vpop.f32.mrf.mxu0
    %v372 = vadd.f32 %v144, %v371
    %v373 = vpop.f32.mrf.mxu0
    %v374 = vadd.f32 %v148, %v373
    %375 = vmatprep.mubr.f32.mxu0 0.0
    %376 = vmatmul.mubr.f32.gmra.mxu0 %v195
    %v377 = vpop.f32.mrf.mxu0
    %v378 = vadd.f32 %v144, %v377
    %v379 = vpop.f32.mrf.mxu0
    %v380 = vadd.f32 %v148, %v379
    %381 = vmatprep.mubr.f32.mxu0 0.0
    %382 = vmatmul.mubr.f32.gmra.mxu0 %v198
    %v383 = vpop.f32.mrf.mxu0
    %v384 = vadd.f32 %v144, %v383
    %v385 = vpop.f32.mrf.mxu0
    %v386 = vadd.f32 %v148, %v385
    %387 = vmatprep.mubr.f32.mxu0 0.0
    %388 = vmatmul.mubr.f32.gmra.mxu0 %v201
    %v389 = vpop.f32.mrf.mxu0
    %v390 = vadd.f32 %v144, %v389
    %v391 = vpop.f32.mrf.mxu0
    %v392 = vadd.f32 %v148, %v391
    %393 = vmatprep.mubr.f32.mxu0 0.0
    %394 = vmatmul.mubr.f32.gmra.mxu0 %v204
    %v395 = vpop.f32.mrf.mxu0
    %v396 = vadd.f32 %v144, %v395
    %v397 = vpop.f32.mrf.mxu0
    %v398 = vadd.f32 %v148, %v397
    %399 = vmatprep.mubr.f32.mxu0 0.0
    %400 = vmatmul.mubr.f32.gmra.mxu0 %v207
    %v401 = vpop.f32.mrf.mxu0
    %v402 = vadd.f32 %v144, %v401
    %v403 = vpop.f32.mrf.mxu0
    %v404 = vadd.f32 %v148, %v403
    %405 = vmatprep.mubr.f32.mxu0 0.0
    %406 = vmatmul.mubr.f32.gmra.mxu0 %v210
    %v407 = vpop.f32.mrf.mxu0
    %v408 = vadd.f32 %v144, %v407
    %v409 = vpop.f32.mrf.mxu0
    %v410 = vadd.f32 %v148, %v409
    %411 = vmatprep.mubr.f32.mxu0 0.0
    %412 = vmatmul.mubr.f32.gmra.mxu0 %v213
    %v413 = vpop.f32.mrf.mxu0
    %v414 = vadd.f32 %v144, %v413
    %v415 = vpop.f32.mrf.mxu0
    %v416 = vadd.f32 %v148, %v415
    %417 = vmatprep.mubr.f32.mxu0 0.0
    %418 = vmatmul.mubr.f32.gmra.mxu0 %v216
    %v419 = vpop.f32.mrf.mxu0
    %v420 = vadd.f32 %v144, %v419
    %v421 = vpop.f32.mrf.mxu0
    %v422 = vadd.f32 %v148, %v421
    %423 = vmatprep.mubr.f32.mxu0 0.0
    %424 = vmatmul.mubr.f32.gmra.mxu0 %v219
    %v425 = vpop.f32.mrf.mxu0
    %v426 = vadd.f32 %v144, %v425
    %v427 = vpop.f32.mrf.mxu0
    %v428 = vadd.f32 %v148, %v427
    %429 = vmatprep.mubr.f32.mxu0 0.0
    %430 = vmatmul.mubr.f32.gmra.mxu0 %v222
    %v431 = vpop.f32.mrf.mxu0
    %v432 = vadd.f32 %v144, %v431
    %v433 = vpop.f32.mrf.mxu0
    %v434 = vadd.f32 %v148, %v433
    %435 = vmatprep.mubr.f32.mxu0 0.0
    %436 = vmatmul.mubr.f32.gmra.mxu0 %v225
    %v437 = vpop.f32.mrf.mxu0
    %v438 = vadd.f32 %v144, %v437
    %v439 = vpop.f32.mrf.mxu0
    %v440 = vadd.f32 %v148, %v439
    %441 = vdwg.mxu0
    %v442 = vmax.f32 %v294, 0.0
    %v443 = vmax.f32 %v296, 0.0
    %v444 = vmax.f32 %v300, 0.0
    %v445 = vmax.f32 %v302, 0.0
    %v446 = vmax.f32 %v306, 0.0
    %v447 = vmax.f32 %v308, 0.0
    %v448 = vmax.f32 %v312, 0.0
    %v449 = vmax.f32 %v314, 0.0
    %v450 = vmax.f32 %v318, 0.0
    %v451 = vmax.f32 %v320, 0.0
    %v452 = vmax.f32 %v324, 0.0
    %v453 = vmax.f32 %v326, 0.0
    %v454 = vmax.f32 %v330, 0.0
    %v455 = vmax.f32 %v332, 0.0
    %v456 = vmax.f32 %v336, 0.0
    %v457 = vmax.f32 %v338, 0.0
    %v458 = vmax.f32 %v342, 0.0
    %v459 = vmax.f32 %v344, 0.0
    %v460 = vmax.f32 %v348, 0.0
    %v461 = vmax.f32 %v350, 0.0
    %v462 = vmax.f32 %v354, 0.0
    %v463 = vmax.f32 %v356, 0.0
    %v464 = vmax.f32 %v360, 0.0
    %v465 = vmax.f32 %v362, 0.0
    %v466 = vmax.f32 %v366, 0.0
    %v467 = vmax.f32 %v368, 0.0
    %v468 = vmax.f32 %v372, 0.0
    %v469 = vmax.f32 %v374, 0.0
    %v470 = vmax.f32 %v378, 0.0
    %v471 = vmax.f32 %v380, 0.0
    %v472 = vmax.f32 %v384, 0.0
    %v473 = vmax.f32 %v386, 0.0
    %v474 = vmax.f32 %v390, 0.0
    %v475 = vmax.f32 %v392, 0.0
    %v476 = vmax.f32 %v396, 0.0
    %v477 = vmax.f32 %v398, 0.0
    %v478 = vmax.f32 %v402, 0.0
    %v479 = vmax.f32 %v404, 0.0
    %v480 = vmax.f32 %v408, 0.0
    %v481 = vmax.f32 %v410, 0.0
    %v482 = vmax.f32 %v414, 0.0
    %v483 = vmax.f32 %v416, 0.0
    %v484 = vmax.f32 %v420, 0.0
    %v485 = vmax.f32 %v422, 0.0
    %v486 = vmax.f32 %v426, 0.0
    %v487 = vmax.f32 %v428, 0.0
    %v488 = vmax.f32 %v432, 0.0
    %v489 = vmax.f32 %v434, 0.0
    %v490 = vmax.f32 %v438, 0.0
    %v491 = vmax.f32 %v440, 0.0
    %v492 = vld [vmem:[#allocation7] sm:$0xff]
    %v493 = vld [vmem:[#allocation7 + $0x8] sm:$0xff]
    %v494 = vld [vmem:[#allocation7 + $0x10] sm:$0xff]
    %v495 = vld [vmem:[#allocation7 + $0x18] sm:$0xff]
    %v496 = vld [vmem:[#allocation7 + $0x20] sm:$0xff]
    %v497 = vld [vmem:[#allocation7 + $0x28] sm:$0xff]
    %v498 = vld [vmem:[#allocation7 + $0x30] sm:$0xff]
    %v499 = vld [vmem:[#allocation7 + $0x38] sm:$0xff]
    %v500 = vld [vmem:[#allocation7 + $0x40] sm:$0xff]
    %v501 = vld [vmem:[#allocation7 + $0x48] sm:$0xff]
    %v502 = vld [vmem:[#allocation7 + $0x50] sm:$0xff]
    %v503 = vld [vmem:[#allocation7 + $0x58] sm:$0xff]
    %v504 = vld [vmem:[#allocation7 + $0x60] sm:$0xff]
    %v505 = vld [vmem:[#allocation7 + $0x68] sm:$0xff]
    %v506 = vld [vmem:[#allocation7 + $0x70] sm:$0xff]
    %v507 = vld [vmem:[#allocation7 + $0x78] sm:$0xff]
    %v508 = vld [vmem:[#allocation7 + $0x80] sm:$0xff]
    %v509 = vld [vmem:[#allocation7 + $0x88] sm:$0xff]
    %v510 = vld [vmem:[#allocation7 + $0x90] sm:$0xff]
    %v511 = vld [vmem:[#allocation7 + $0x98] sm:$0xff]
    %v512 = vld [vmem:[#allocation7 + $0xa0] sm:$0xff]
    %v513 = vld [vmem:[#allocation7 + $0xa8] sm:$0xff]
    %v514 = vld [vmem:[#allocation7 + $0xb0] sm:$0xff]
    %v515 = vld [vmem:[#allocation7 + $0xb8] sm:$0xff]
    %v516 = vld [vmem:[#allocation7 + $0xc0] sm:$0xff]
    %v517 = vld [vmem:[#allocation7 + $0xc8] sm:$0xff]
    %v518 = vld [vmem:[#allocation7 + $0xd0] sm:$0xff]
    %v519 = vld [vmem:[#allocation7 + $0xd8] sm:$0xff]
    %v520 = vld [vmem:[#allocation7 + $0xe0] sm:$0xff]
    %v521 = vld [vmem:[#allocation7 + $0xe8] sm:$0xff]
    %v522 = vld [vmem:[#allocation7 + $0xf0] sm:$0xff]
    %v523 = vld [vmem:[#allocation7 + $0xf8] sm:$0xff]
    %v524 = vld [vmem:[#allocation7 + $0x100] sm:$0xff]
    %v525 = vld [vmem:[#allocation7 + $0x108] sm:$0xff]
    %v526 = vld [vmem:[#allocation7 + $0x110] sm:$0xff]
    %v527 = vld [vmem:[#allocation7 + $0x118] sm:$0xff]
    %v528 = vld [vmem:[#allocation7 + $0x120] sm:$0xff]
    %v529 = vld [vmem:[#allocation7 + $0x128] sm:$0xff]
    %v530 = vld [vmem:[#allocation7 + $0x130] sm:$0xff]
    %v531 = vld [vmem:[#allocation7 + $0x138] sm:$0xff]
    %v532 = vld [vmem:[#allocation7 + $0x140] sm:$0xff]
    %v533 = vld [vmem:[#allocation7 + $0x148] sm:$0xff]
    %v534 = vld [vmem:[#allocation7 + $0x150] sm:$0xff]
    %v535 = vld [vmem:[#allocation7 + $0x158] sm:$0xff]
    %v536 = vld [vmem:[#allocation7 + $0x160] sm:$0xff]
    %v537 = vld [vmem:[#allocation7 + $0x168] sm:$0xff]
    %v538 = vld [vmem:[#allocation7 + $0x170] sm:$0xff]
    %v539 = vld [vmem:[#allocation7 + $0x178] sm:$0xff]
    %v540 = vld [vmem:[#allocation7 + $0x180] sm:$0xff]
    %v541 = vld [vmem:[#allocation7 + $0x188] sm:$0xff]
    %v542 = vld [vmem:[#allocation7 + $0x190] sm:$0xff]
    %v543 = vld [vmem:[#allocation7 + $0x198] sm:$0xff]
    %v544 = vld [vmem:[#allocation7 + $0x1a0] sm:$0xff]
    %v545 = vld [vmem:[#allocation7 + $0x1a8] sm:$0xff]
    %v546 = vld [vmem:[#allocation7 + $0x1b0] sm:$0xff]
    %v547 = vld [vmem:[#allocation7 + $0x1b8] sm:$0xff]
    %v548 = vld [vmem:[#allocation7 + $0x1c0] sm:$0xff]
    %v549 = vld [vmem:[#allocation7 + $0x1c8] sm:$0xff]
    %v550 = vld [vmem:[#allocation7 + $0x1d0] sm:$0xff]
    %v551 = vld [vmem:[#allocation7 + $0x1d8] sm:$0xff]
    %v552 = vld [vmem:[#allocation7 + $0x1e0] sm:$0xff]
    %v553 = vld [vmem:[#allocation7 + $0x1e8] sm:$0xff]
    %v554 = vld [vmem:[#allocation7 + $0x1f0] sm:$0xff]
    %v555 = vld [vmem:[#allocation7 + $0x1f8] sm:$0xff]
    %v556 = vld [vmem:[%s4] sm:$0x3]
    %v558 = vlaneseq
    %v559 = vshrl.u32 %v558, 7
    %v560 = vsub.s32 0, %v559
    %v561 = vrot.slane %v556, %v560
    %v562 = vlaneseq
    %v563 = vshrl.u32 %v562, 7
    %v564 = vsub.s32 1, %v563
    %v565 = vrot.slane %v556, %v564
    %568 = vmatprep.subr.mxu0 %v523
    %569 = vmatpush1.msra.mxu0 %v522
    %570 = vmatprep.subr.mxu0 %v521
    %571 = vmatpush1.msra.mxu0 %v520
    %572 = vmatprep.subr.mxu0 %v519
    %573 = vmatpush1.msra.mxu0 %v518
    %574 = vmatprep.subr.mxu0 %v517
    %575 = vmatpush1.msra.mxu0 %v516
    %576 = vmatprep.subr.mxu0 %v515
    %577 = vmatpush1.msra.mxu0 %v514
    %578 = vmatprep.subr.mxu0 %v513
    %579 = vmatpush1.msra.mxu0 %v512
    %580 = vmatprep.subr.mxu0 %v511
    %581 = vmatpush1.msra.mxu0 %v510
    %582 = vmatprep.subr.mxu0 %v509
    %583 = vmatpush1.msra.mxu0 %v508
    %584 = vmatprep.subr.mxu0 %v507
    %585 = vmatpush1.msra.mxu0 %v506
    %586 = vmatprep.subr.mxu0 %v505
    %587 = vmatpush1.msra.mxu0 %v504
    %588 = vmatprep.subr.mxu0 %v503
    %589 = vmatpush1.msra.mxu0 %v502
    %590 = vmatprep.subr.mxu0 %v501
    %591 = vmatpush1.msra.mxu0 %v500
    %592 = vmatprep.subr.mxu0 %v499
    %593 = vmatpush1.msra.mxu0 %v498
    %594 = vmatprep.subr.mxu0 %v497
    %595 = vmatpush1.msra.mxu0 %v496
    %596 = vmatprep.subr.mxu0 %v495
    %597 = vmatpush1.msra.mxu0 %v494
    %598 = vmatprep.subr.mxu0 %v493
    %599 = vmatpush1.msra.mxu0 %v492
    %600 = vmatprep.subr.mxu0 %v555
    %601 = vmatpush2.msra.mxu0 %v554
    %602 = vmatprep.subr.mxu0 %v553
    %603 = vmatpush2.msra.mxu0 %v552
    %604 = vmatprep.subr.mxu0 %v551
    %605 = vmatpush2.msra.mxu0 %v550
    %606 = vmatprep.subr.mxu0 %v549
    %607 = vmatpush2.msra.mxu0 %v548
    %608 = vmatprep.subr.mxu0 %v547
    %609 = vmatpush2.msra.mxu0 %v546
    %610 = vmatprep.subr.mxu0 %v545
    %611 = vmatpush2.msra.mxu0 %v544
    %612 = vmatprep.subr.mxu0 %v543
    %613 = vmatpush2.msra.mxu0 %v542
    %614 = vmatprep.subr.mxu0 %v541
    %615 = vmatpush2.msra.mxu0 %v540
    %616 = vmatprep.subr.mxu0 %v539
    %617 = vmatpush2.msra.mxu0 %v538
    %618 = vmatprep.subr.mxu0 %v537
    %619 = vmatpush2.msra.mxu0 %v536
    %620 = vmatprep.subr.mxu0 %v535
    %621 = vmatpush2.msra.mxu0 %v534
    %622 = vmatprep.subr.mxu0 %v533
    %623 = vmatpush2.msra.mxu0 %v532
    %624 = vmatprep.subr.mxu0 %v531
    %625 = vmatpush2.msra.mxu0 %v530
    %626 = vmatprep.subr.mxu0 %v529
    %627 = vmatpush2.msra.mxu0 %v528
    %628 = vmatprep.subr.mxu0 %v527
    %629 = vmatpush2.msra.mxu0 %v526
    %630 = vmatprep.subr.mxu0 %v525
    %631 = vmatpush2.msra.mxu0 %v524
    %632 = vmatprep.mubr.f32.mxu0 %v443
    %633 = vmatmul.mubr.f32.gmra.mxu0 %v442
    %v634 = vpop.f32.mrf.mxu0
    %v635 = vadd.f32 %v561, %v634
    %v636 = vpop.f32.mrf.mxu0
    %v637 = vadd.f32 %v565, %v636
    %638 = vmatprep.mubr.f32.mxu0 %v445
    %639 = vmatmul.mubr.f32.gmra.mxu0 %v444
    %v640 = vpop.f32.mrf.mxu0
    %v641 = vadd.f32 %v561, %v640
    %v642 = vpop.f32.mrf.mxu0
    %v643 = vadd.f32 %v565, %v642
    %644 = vmatprep.mubr.f32.mxu0 %v447
    %645 = vmatmul.mubr.f32.gmra.mxu0 %v446
    %v646 = vpop.f32.mrf.mxu0
    %v647 = vadd.f32 %v561, %v646
    %v648 = vpop.f32.mrf.mxu0
    %v649 = vadd.f32 %v565, %v648
    %650 = vmatprep.mubr.f32.mxu0 %v449
    %651 = vmatmul.mubr.f32.gmra.mxu0 %v448
    %v652 = vpop.f32.mrf.mxu0
    %v653 = vadd.f32 %v561, %v652
    %v654 = vpop.f32.mrf.mxu0
    %v655 = vadd.f32 %v565, %v654
    %656 = vmatprep.mubr.f32.mxu0 %v451
    %657 = vmatmul.mubr.f32.gmra.mxu0 %v450
    %v658 = vpop.f32.mrf.mxu0
    %v659 = vadd.f32 %v561, %v658
    %v660 = vpop.f32.mrf.mxu0
    %v661 = vadd.f32 %v565, %v660
    %662 = vmatprep.mubr.f32.mxu0 %v453
    %663 = vmatmul.mubr.f32.gmra.mxu0 %v452
    %v664 = vpop.f32.mrf.mxu0
    %v665 = vadd.f32 %v561, %v664
    %v666 = vpop.f32.mrf.mxu0
    %v667 = vadd.f32 %v565, %v666
    %668 = vmatprep.mubr.f32.mxu0 %v455
    %669 = vmatmul.mubr.f32.gmra.mxu0 %v454
    %v670 = vpop.f32.mrf.mxu0
    %v671 = vadd.f32 %v561, %v670
    %v672 = vpop.f32.mrf.mxu0
    %v673 = vadd.f32 %v565, %v672
    %674 = vmatprep.mubr.f32.mxu0 %v457
    %675 = vmatmul.mubr.f32.gmra.mxu0 %v456
    %v676 = vpop.f32.mrf.mxu0
    %v677 = vadd.f32 %v561, %v676
    %v678 = vpop.f32.mrf.mxu0
    %v679 = vadd.f32 %v565, %v678
    %680 = vmatprep.mubr.f32.mxu0 %v459
    %681 = vmatmul.mubr.f32.gmra.mxu0 %v458
    %v682 = vpop.f32.mrf.mxu0
    %v683 = vadd.f32 %v561, %v682
    %v684 = vpop.f32.mrf.mxu0
    %v685 = vadd.f32 %v565, %v684
    %686 = vmatprep.mubr.f32.mxu0 %v461
    %687 = vmatmul.mubr.f32.gmra.mxu0 %v460
    %v688 = vpop.f32.mrf.mxu0
    %v689 = vadd.f32 %v561, %v688
    %v690 = vpop.f32.mrf.mxu0
    %v691 = vadd.f32 %v565, %v690
    %692 = vmatprep.mubr.f32.mxu0 %v463
    %693 = vmatmul.mubr.f32.gmra.mxu0 %v462
    %v694 = vpop.f32.mrf.mxu0
    %v695 = vadd.f32 %v561, %v694
    %v696 = vpop.f32.mrf.mxu0
    %v697 = vadd.f32 %v565, %v696
    %698 = vmatprep.mubr.f32.mxu0 %v465
    %699 = vmatmul.mubr.f32.gmra.mxu0 %v464
    %v700 = vpop.f32.mrf.mxu0
    %v701 = vadd.f32 %v561, %v700
    %v702 = vpop.f32.mrf.mxu0
    %v703 = vadd.f32 %v565, %v702
    %704 = vmatprep.mubr.f32.mxu0 %v467
    %705 = vmatmul.mubr.f32.gmra.mxu0 %v466
    %v706 = vpop.f32.mrf.mxu0
    %v707 = vadd.f32 %v561, %v706
    %v708 = vpop.f32.mrf.mxu0
    %v709 = vadd.f32 %v565, %v708
    %710 = vmatprep.mubr.f32.mxu0 %v469
    %711 = vmatmul.mubr.f32.gmra.mxu0 %v468
    %v712 = vpop.f32.mrf.mxu0
    %v713 = vadd.f32 %v561, %v712
    %v714 = vpop.f32.mrf.mxu0
    %v715 = vadd.f32 %v565, %v714
    %716 = vmatprep.mubr.f32.mxu0 %v471
    %717 = vmatmul.mubr.f32.gmra.mxu0 %v470
    %v718 = vpop.f32.mrf.mxu0
    %v719 = vadd.f32 %v561, %v718
    %v720 = vpop.f32.mrf.mxu0
    %v721 = vadd.f32 %v565, %v720
    %722 = vmatprep.mubr.f32.mxu0 %v473
    %723 = vmatmul.mubr.f32.gmra.mxu0 %v472
    %v724 = vpop.f32.mrf.mxu0
    %v725 = vadd.f32 %v561, %v724
    %v726 = vpop.f32.mrf.mxu0
    %v727 = vadd.f32 %v565, %v726
    %728 = vmatprep.mubr.f32.mxu0 %v475
    %729 = vmatmul.mubr.f32.gmra.mxu0 %v474
    %v730 = vpop.f32.mrf.mxu0
    %v731 = vadd.f32 %v561, %v730
    %v732 = vpop.f32.mrf.mxu0
    %v733 = vadd.f32 %v565, %v732
    %734 = vmatprep.mubr.f32.mxu0 %v477
    %735 = vmatmul.mubr.f32.gmra.mxu0 %v476
    %v736 = vpop.f32.mrf.mxu0
    %v737 = vadd.f32 %v561, %v736
    %v738 = vpop.f32.mrf.mxu0
    %v739 = vadd.f32 %v565, %v738
    %740 = vmatprep.mubr.f32.mxu0 %v479
    %741 = vmatmul.mubr.f32.gmra.mxu0 %v478
    %v742 = vpop.f32.mrf.mxu0
    %v743 = vadd.f32 %v561, %v742
    %v744 = vpop.f32.mrf.mxu0
    %v745 = vadd.f32 %v565, %v744
    %746 = vmatprep.mubr.f32.mxu0 %v481
    %747 = vmatmul.mubr.f32.gmra.mxu0 %v480
    %v748 = vpop.f32.mrf.mxu0
    %v749 = vadd.f32 %v561, %v748
    %v750 = vpop.f32.mrf.mxu0
    %v751 = vadd.f32 %v565, %v750
    %752 = vmatprep.mubr.f32.mxu0 %v483
    %753 = vmatmul.mubr.f32.gmra.mxu0 %v482
    %v754 = vpop.f32.mrf.mxu0
    %v755 = vadd.f32 %v561, %v754
    %v756 = vpop.f32.mrf.mxu0
    %v757 = vadd.f32 %v565, %v756
    %758 = vmatprep.mubr.f32.mxu0 %v485
    %759 = vmatmul.mubr.f32.gmra.mxu0 %v484
    %v760 = vpop.f32.mrf.mxu0
    %v761 = vadd.f32 %v561, %v760
    %v762 = vpop.f32.mrf.mxu0
    %v763 = vadd.f32 %v565, %v762
    %764 = vmatprep.mubr.f32.mxu0 %v487
    %765 = vmatmul.mubr.f32.gmra.mxu0 %v486
    %v766 = vpop.f32.mrf.mxu0
    %v767 = vadd.f32 %v561, %v766
    %v768 = vpop.f32.mrf.mxu0
    %v769 = vadd.f32 %v565, %v768
    %770 = vmatprep.mubr.f32.mxu0 %v489
    %771 = vmatmul.mubr.f32.gmra.mxu0 %v488
    %v772 = vpop.f32.mrf.mxu0
    %v773 = vadd.f32 %v561, %v772
    %v774 = vpop.f32.mrf.mxu0
    %v775 = vadd.f32 %v565, %v774
    %776 = vmatprep.mubr.f32.mxu0 %v491
    %777 = vmatmul.mubr.f32.gmra.mxu0 %v490
    %v778 = vpop.f32.mrf.mxu0
    %v779 = vadd.f32 %v561, %v778
    %v780 = vpop.f32.mrf.mxu0
    %v781 = vadd.f32 %v565, %v780
    %782 = vdwg.mxu0
    %v783 = vmax.f32 %v635, 0.0
    %v784 = vmax.f32 %v637, 0.0
    %v785 = vmax.f32 %v641, 0.0
    %v786 = vmax.f32 %v643, 0.0
    %v787 = vmax.f32 %v647, 0.0
    %v788 = vmax.f32 %v649, 0.0
    %v789 = vmax.f32 %v653, 0.0
    %v790 = vmax.f32 %v655, 0.0
    %v791 = vmax.f32 %v659, 0.0
    %v792 = vmax.f32 %v661, 0.0
    %v793 = vmax.f32 %v665, 0.0
    %v794 = vmax.f32 %v667, 0.0
    %v795 = vmax.f32 %v671, 0.0
    %v796 = vmax.f32 %v673, 0.0
    %v797 = vmax.f32 %v677, 0.0
    %v798 = vmax.f32 %v679, 0.0
    %v799 = vmax.f32 %v683, 0.0
    %v800 = vmax.f32 %v685, 0.0
    %v801 = vmax.f32 %v689, 0.0
    %v802 = vmax.f32 %v691, 0.0
    %v803 = vmax.f32 %v695, 0.0
    %v804 = vmax.f32 %v697, 0.0
    %v805 = vmax.f32 %v701, 0.0
    %v806 = vmax.f32 %v703, 0.0
    %v807 = vmax.f32 %v707, 0.0
    %v808 = vmax.f32 %v709, 0.0
    %v809 = vmax.f32 %v713, 0.0
    %v810 = vmax.f32 %v715, 0.0
    %v811 = vmax.f32 %v719, 0.0
    %v812 = vmax.f32 %v721, 0.0
    %v813 = vmax.f32 %v725, 0.0
    %v814 = vmax.f32 %v727, 0.0
    %v815 = vmax.f32 %v731, 0.0
    %v816 = vmax.f32 %v733, 0.0
    %v817 = vmax.f32 %v737, 0.0
    %v818 = vmax.f32 %v739, 0.0
    %v819 = vmax.f32 %v743, 0.0
    %v820 = vmax.f32 %v745, 0.0
    %v821 = vmax.f32 %v749, 0.0
    %v822 = vmax.f32 %v751, 0.0
    %v823 = vmax.f32 %v755, 0.0
    %v824 = vmax.f32 %v757, 0.0
    %v825 = vmax.f32 %v761, 0.0
    %v826 = vmax.f32 %v763, 0.0
    %v827 = vmax.f32 %v767, 0.0
    %v828 = vmax.f32 %v769, 0.0
    %v829 = vmax.f32 %v773, 0.0
    %v830 = vmax.f32 %v775, 0.0
    %v831 = vmax.f32 %v779, 0.0
    %v832 = vmax.f32 %v781, 0.0
    %v833 = vld [vmem:[#allocation8] sm:$0xff]
    %v834 = vld [vmem:[#allocation8 + $0x8] sm:$0xff]
    %v835 = vld [vmem:[#allocation8 + $0x10] sm:$0xff]
    %v836 = vld [vmem:[#allocation8 + $0x18] sm:$0xff]
    %v837 = vld [vmem:[#allocation8 + $0x20] sm:$0xff]
    %v838 = vld [vmem:[#allocation8 + $0x28] sm:$0xff]
    %v839 = vld [vmem:[#allocation8 + $0x30] sm:$0xff]
    %v840 = vld [vmem:[#allocation8 + $0x38] sm:$0xff]
    %v841 = vld [vmem:[#allocation8 + $0x40] sm:$0xff]
    %v842 = vld [vmem:[#allocation8 + $0x48] sm:$0xff]
    %v843 = vld [vmem:[#allocation8 + $0x50] sm:$0xff]
    %v844 = vld [vmem:[#allocation8 + $0x58] sm:$0xff]
    %v845 = vld [vmem:[#allocation8 + $0x60] sm:$0xff]
    %v846 = vld [vmem:[#allocation8 + $0x68] sm:$0xff]
    %v847 = vld [vmem:[#allocation8 + $0x70] sm:$0xff]
    %v848 = vld [vmem:[#allocation8 + $0x78] sm:$0xff]
    %v849 = vld [vmem:[#allocation8 + $0x80] sm:$0xff]
    %v850 = vld [vmem:[#allocation8 + $0x88] sm:$0xff]
    %v851 = vld [vmem:[#allocation8 + $0x90] sm:$0xff]
    %v852 = vld [vmem:[#allocation8 + $0x98] sm:$0xff]
    %v853 = vld [vmem:[#allocation8 + $0xa0] sm:$0xff]
    %v854 = vld [vmem:[#allocation8 + $0xa8] sm:$0xff]
    %v855 = vld [vmem:[#allocation8 + $0xb0] sm:$0xff]
    %v856 = vld [vmem:[#allocation8 + $0xb8] sm:$0xff]
    %v857 = vld [vmem:[#allocation8 + $0xc0] sm:$0xff]
    %v858 = vld [vmem:[#allocation8 + $0xc8] sm:$0xff]
    %v859 = vld [vmem:[#allocation8 + $0xd0] sm:$0xff]
    %v860 = vld [vmem:[#allocation8 + $0xd8] sm:$0xff]
    %v861 = vld [vmem:[#allocation8 + $0xe0] sm:$0xff]
    %v862 = vld [vmem:[#allocation8 + $0xe8] sm:$0xff]
    %v863 = vld [vmem:[#allocation8 + $0xf0] sm:$0xff]
    %v864 = vld [vmem:[#allocation8 + $0xf8] sm:$0xff]
    %v865 = vld [vmem:[#allocation8 + $0x100] sm:$0xff]
    %v866 = vld [vmem:[#allocation8 + $0x108] sm:$0xff]
    %v867 = vld [vmem:[#allocation8 + $0x110] sm:$0xff]
    %v868 = vld [vmem:[#allocation8 + $0x118] sm:$0xff]
    %v869 = vld [vmem:[#allocation8 + $0x120] sm:$0xff]
    %v870 = vld [vmem:[#allocation8 + $0x128] sm:$0xff]
    %v871 = vld [vmem:[#allocation8 + $0x130] sm:$0xff]
    %v872 = vld [vmem:[#allocation8 + $0x138] sm:$0xff]
    %v873 = vld [vmem:[#allocation8 + $0x140] sm:$0xff]
    %v874 = vld [vmem:[#allocation8 + $0x148] sm:$0xff]
    %v875 = vld [vmem:[#allocation8 + $0x150] sm:$0xff]
    %v876 = vld [vmem:[#allocation8 + $0x158] sm:$0xff]
    %v877 = vld [vmem:[#allocation8 + $0x160] sm:$0xff]
    %v878 = vld [vmem:[#allocation8 + $0x168] sm:$0xff]
    %v879 = vld [vmem:[#allocation8 + $0x170] sm:$0xff]
    %v880 = vld [vmem:[#allocation8 + $0x178] sm:$0xff]
    %v881 = vld [vmem:[#allocation8 + $0x180] sm:$0xff]
    %v882 = vld [vmem:[#allocation8 + $0x188] sm:$0xff]
    %v883 = vld [vmem:[#allocation8 + $0x190] sm:$0xff]
    %v884 = vld [vmem:[#allocation8 + $0x198] sm:$0xff]
    %v885 = vld [vmem:[#allocation8 + $0x1a0] sm:$0xff]
    %v886 = vld [vmem:[#allocation8 + $0x1a8] sm:$0xff]
    %v887 = vld [vmem:[#allocation8 + $0x1b0] sm:$0xff]
    %v888 = vld [vmem:[#allocation8 + $0x1b8] sm:$0xff]
    %v889 = vld [vmem:[#allocation8 + $0x1c0] sm:$0xff]
    %v890 = vld [vmem:[#allocation8 + $0x1c8] sm:$0xff]
    %v891 = vld [vmem:[#allocation8 + $0x1d0] sm:$0xff]
    %v892 = vld [vmem:[#allocation8 + $0x1d8] sm:$0xff]
    %v893 = vld [vmem:[#allocation8 + $0x1e0] sm:$0xff]
    %v894 = vld [vmem:[#allocation8 + $0x1e8] sm:$0xff]
    %v895 = vld [vmem:[#allocation8 + $0x1f0] sm:$0xff]
    %v896 = vld [vmem:[#allocation8 + $0x1f8] sm:$0xff]
    %v897 = vld [vmem:[%s6] sm:$0x3]
    %v899 = vlaneseq
    %v900 = vshrl.u32 %v899, 7
    %v901 = vsub.s32 0, %v900
    %v902 = vrot.slane %v897, %v901
    %v903 = vlaneseq
    %v904 = vshrl.u32 %v903, 7
    %v905 = vsub.s32 1, %v904
    %v906 = vrot.slane %v897, %v905
    %909 = vmatprep.subr.mxu0 %v864
    %910 = vmatpush1.msra.mxu0 %v863
    %911 = vmatprep.subr.mxu0 %v862
    %912 = vmatpush1.msra.mxu0 %v861
    %913 = vmatprep.subr.mxu0 %v860
    %914 = vmatpush1.msra.mxu0 %v859
    %915 = vmatprep.subr.mxu0 %v858
    %916 = vmatpush1.msra.mxu0 %v857
    %917 = vmatprep.subr.mxu0 %v856
    %918 = vmatpush1.msra.mxu0 %v855
    %919 = vmatprep.subr.mxu0 %v854
    %920 = vmatpush1.msra.mxu0 %v853
    %921 = vmatprep.subr.mxu0 %v852
    %922 = vmatpush1.msra.mxu0 %v851
    %923 = vmatprep.subr.mxu0 %v850
    %924 = vmatpush1.msra.mxu0 %v849
    %925 = vmatprep.subr.mxu0 %v848
    %926 = vmatpush1.msra.mxu0 %v847
    %927 = vmatprep.subr.mxu0 %v846
    %928 = vmatpush1.msra.mxu0 %v845
    %929 = vmatprep.subr.mxu0 %v844
    %930 = vmatpush1.msra.mxu0 %v843
    %931 = vmatprep.subr.mxu0 %v842
    %932 = vmatpush1.msra.mxu0 %v841
    %933 = vmatprep.subr.mxu0 %v840
    %934 = vmatpush1.msra.mxu0 %v839
    %935 = vmatprep.subr.mxu0 %v838
    %936 = vmatpush1.msra.mxu0 %v837
    %937 = vmatprep.subr.mxu0 %v836
    %938 = vmatpush1.msra.mxu0 %v835
    %939 = vmatprep.subr.mxu0 %v834
    %940 = vmatpush1.msra.mxu0 %v833
    %941 = vmatprep.subr.mxu0 %v896
    %942 = vmatpush2.msra.mxu0 %v895
    %943 = vmatprep.subr.mxu0 %v894
    %944 = vmatpush2.msra.mxu0 %v893
    %945 = vmatprep.subr.mxu0 %v892
    %946 = vmatpush2.msra.mxu0 %v891
    %947 = vmatprep.subr.mxu0 %v890
    %948 = vmatpush2.msra.mxu0 %v889
    %949 = vmatprep.subr.mxu0 %v888
    %950 = vmatpush2.msra.mxu0 %v887
    %951 = vmatprep.subr.mxu0 %v886
    %952 = vmatpush2.msra.mxu0 %v885
    %953 = vmatprep.subr.mxu0 %v884
    %954 = vmatpush2.msra.mxu0 %v883
    %955 = vmatprep.subr.mxu0 %v882
    %956 = vmatpush2.msra.mxu0 %v881
    %957 = vmatprep.subr.mxu0 %v880
    %958 = vmatpush2.msra.mxu0 %v879
    %959 = vmatprep.subr.mxu0 %v878
    %960 = vmatpush2.msra.mxu0 %v877
    %961 = vmatprep.subr.mxu0 %v876
    %962 = vmatpush2.msra.mxu0 %v875
    %963 = vmatprep.subr.mxu0 %v874
    %964 = vmatpush2.msra.mxu0 %v873
    %965 = vmatprep.subr.mxu0 %v872
    %966 = vmatpush2.msra.mxu0 %v871
    %967 = vmatprep.subr.mxu0 %v870
    %968 = vmatpush2.msra.mxu0 %v869
    %969 = vmatprep.subr.mxu0 %v868
    %970 = vmatpush2.msra.mxu0 %v867
    %971 = vmatprep.subr.mxu0 %v866
    %972 = vmatpush2.msra.mxu0 %v865
    %973 = vmatprep.mubr.f32.mxu0 %v784
    %974 = vmatmul.mubr.f32.gmra.mxu0 %v783
    %v975 = vpop.f32.mrf.mxu0
    %v976 = vadd.f32 %v902, %v975
    %v977 = vpop.f32.mrf.mxu0
    %v978 = vadd.f32 %v906, %v977
    %979 = vmatprep.mubr.f32.mxu0 %v786
    %980 = vmatmul.mubr.f32.gmra.mxu0 %v785
    %v981 = vpop.f32.mrf.mxu0
    %v982 = vadd.f32 %v902, %v981
    %v983 = vpop.f32.mrf.mxu0
    %v984 = vadd.f32 %v906, %v983
    %985 = vmatprep.mubr.f32.mxu0 %v788
    %986 = vmatmul.mubr.f32.gmra.mxu0 %v787
    %v987 = vpop.f32.mrf.mxu0
    %v988 = vadd.f32 %v902, %v987
    %v989 = vpop.f32.mrf.mxu0
    %v990 = vadd.f32 %v906, %v989
    %991 = vmatprep.mubr.f32.mxu0 %v790
    %992 = vmatmul.mubr.f32.gmra.mxu0 %v789
    %v993 = vpop.f32.mrf.mxu0
    %v994 = vadd.f32 %v902, %v993
    %v995 = vpop.f32.mrf.mxu0
    %v996 = vadd.f32 %v906, %v995
    %997 = vmatprep.mubr.f32.mxu0 %v792
    %998 = vmatmul.mubr.f32.gmra.mxu0 %v791
    %v999 = vpop.f32.mrf.mxu0
    %v1000 = vadd.f32 %v902, %v999
    %v1001 = vpop.f32.mrf.mxu0
    %v1002 = vadd.f32 %v906, %v1001
    %1003 = vmatprep.mubr.f32.mxu0 %v794
    %1004 = vmatmul.mubr.f32.gmra.mxu0 %v793
    %v1005 = vpop.f32.mrf.mxu0
    %v1006 = vadd.f32 %v902, %v1005
    %v1007 = vpop.f32.mrf.mxu0
    %v1008 = vadd.f32 %v906, %v1007
    %1009 = vmatprep.mubr.f32.mxu0 %v796
    %1010 = vmatmul.mubr.f32.gmra.mxu0 %v795
    %v1011 = vpop.f32.mrf.mxu0
    %v1012 = vadd.f32 %v902, %v1011
    %v1013 = vpop.f32.mrf.mxu0
    %v1014 = vadd.f32 %v906, %v1013
    %1015 = vmatprep.mubr.f32.mxu0 %v798
    %1016 = vmatmul.mubr.f32.gmra.mxu0 %v797
    %v1017 = vpop.f32.mrf.mxu0
    %v1018 = vadd.f32 %v902, %v1017
    %v1019 = vpop.f32.mrf.mxu0
    %v1020 = vadd.f32 %v906, %v1019
    %1021 = vmatprep.mubr.f32.mxu0 %v800
    %1022 = vmatmul.mubr.f32.gmra.mxu0 %v799
    %v1023 = vpop.f32.mrf.mxu0
    %v1024 = vadd.f32 %v902, %v1023
    %v1025 = vpop.f32.mrf.mxu0
    %v1026 = vadd.f32 %v906, %v1025
    %1027 = vmatprep.mubr.f32.mxu0 %v802
    %1028 = vmatmul.mubr.f32.gmra.mxu0 %v801
    %v1029 = vpop.f32.mrf.mxu0
    %v1030 = vadd.f32 %v902, %v1029
    %v1031 = vpop.f32.mrf.mxu0
    %v1032 = vadd.f32 %v906, %v1031
    %1033 = vmatprep.mubr.f32.mxu0 %v804
    %1034 = vmatmul.mubr.f32.gmra.mxu0 %v803
    %v1035 = vpop.f32.mrf.mxu0
    %v1036 = vadd.f32 %v902, %v1035
    %v1037 = vpop.f32.mrf.mxu0
    %v1038 = vadd.f32 %v906, %v1037
    %1039 = vmatprep.mubr.f32.mxu0 %v806
    %1040 = vmatmul.mubr.f32.gmra.mxu0 %v805
    %v1041 = vpop.f32.mrf.mxu0
    %v1042 = vadd.f32 %v902, %v1041
    %v1043 = vpop.f32.mrf.mxu0
    %v1044 = vadd.f32 %v906, %v1043
    %1045 = vmatprep.mubr.f32.mxu0 %v808
    %1046 = vmatmul.mubr.f32.gmra.mxu0 %v807
    %v1047 = vpop.f32.mrf.mxu0
    %v1048 = vadd.f32 %v902, %v1047
    %v1049 = vpop.f32.mrf.mxu0
    %v1050 = vadd.f32 %v906, %v1049
    %1051 = vmatprep.mubr.f32.mxu0 %v810
    %1052 = vmatmul.mubr.f32.gmra.mxu0 %v809
    %v1053 = vpop.f32.mrf.mxu0
    %v1054 = vadd.f32 %v902, %v1053
    %v1055 = vpop.f32.mrf.mxu0
    %v1056 = vadd.f32 %v906, %v1055
    %1057 = vmatprep.mubr.f32.mxu0 %v812
    %1058 = vmatmul.mubr.f32.gmra.mxu0 %v811
    %v1059 = vpop.f32.mrf.mxu0
    %v1060 = vadd.f32 %v902, %v1059
    %v1061 = vpop.f32.mrf.mxu0
    %v1062 = vadd.f32 %v906, %v1061
    %1063 = vmatprep.mubr.f32.mxu0 %v814
    %1064 = vmatmul.mubr.f32.gmra.mxu0 %v813
    %v1065 = vpop.f32.mrf.mxu0
    %v1066 = vadd.f32 %v902, %v1065
    %v1067 = vpop.f32.mrf.mxu0
    %v1068 = vadd.f32 %v906, %v1067
    %1069 = vmatprep.mubr.f32.mxu0 %v816
    %1070 = vmatmul.mubr.f32.gmra.mxu0 %v815
    %v1071 = vpop.f32.mrf.mxu0
    %v1072 = vadd.f32 %v902, %v1071
    %v1073 = vpop.f32.mrf.mxu0
    %v1074 = vadd.f32 %v906, %v1073
    %1075 = vmatprep.mubr.f32.mxu0 %v818
    %1076 = vmatmul.mubr.f32.gmra.mxu0 %v817
    %v1077 = vpop.f32.mrf.mxu0
    %v1078 = vadd.f32 %v902, %v1077
    %v1079 = vpop.f32.mrf.mxu0
    %v1080 = vadd.f32 %v906, %v1079
    %1081 = vmatprep.mubr.f32.mxu0 %v820
    %1082 = vmatmul.mubr.f32.gmra.mxu0 %v819
    %v1083 = vpop.f32.mrf.mxu0
    %v1084 = vadd.f32 %v902, %v1083
    %v1085 = vpop.f32.mrf.mxu0
    %v1086 = vadd.f32 %v906, %v1085
    %1087 = vmatprep.mubr.f32.mxu0 %v822
    %1088 = vmatmul.mubr.f32.gmra.mxu0 %v821
    %v1089 = vpop.f32.mrf.mxu0
    %v1090 = vadd.f32 %v902, %v1089
    %v1091 = vpop.f32.mrf.mxu0
    %v1092 = vadd.f32 %v906, %v1091
    %1093 = vmatprep.mubr.f32.mxu0 %v824
    %1094 = vmatmul.mubr.f32.gmra.mxu0 %v823
    %v1095 = vpop.f32.mrf.mxu0
    %v1096 = vadd.f32 %v902, %v1095
    %v1097 = vpop.f32.mrf.mxu0
    %v1098 = vadd.f32 %v906, %v1097
    %1099 = vmatprep.mubr.f32.mxu0 %v826
    %1100 = vmatmul.mubr.f32.gmra.mxu0 %v825
    %v1101 = vpop.f32.mrf.mxu0
    %v1102 = vadd.f32 %v902, %v1101
    %v1103 = vpop.f32.mrf.mxu0
    %v1104 = vadd.f32 %v906, %v1103
    %1105 = vmatprep.mubr.f32.mxu0 %v828
    %1106 = vmatmul.mubr.f32.gmra.mxu0 %v827
    %v1107 = vpop.f32.mrf.mxu0
    %v1108 = vadd.f32 %v902, %v1107
    %v1109 = vpop.f32.mrf.mxu0
    %v1110 = vadd.f32 %v906, %v1109
    %1111 = vmatprep.mubr.f32.mxu0 %v830
    %1112 = vmatmul.mubr.f32.gmra.mxu0 %v829
    %v1113 = vpop.f32.mrf.mxu0
    %v1114 = vadd.f32 %v902, %v1113
    %v1115 = vpop.f32.mrf.mxu0
    %v1116 = vadd.f32 %v906, %v1115
    %1117 = vmatprep.mubr.f32.mxu0 %v832
    %1118 = vmatmul.mubr.f32.gmra.mxu0 %v831
    %v1119 = vpop.f32.mrf.mxu0
    %v1120 = vadd.f32 %v902, %v1119
    %v1121 = vpop.f32.mrf.mxu0
    %v1122 = vadd.f32 %v906, %v1121
    %1123 = vdwg.mxu0
    %v1124 = vmax.f32 %v978, -20.0
    %v1125 = vmax.f32 %v984, -20.0
    %v1126 = vmax.f32 %v990, -20.0
    %v1127 = vmax.f32 %v996, -20.0
    %v1128 = vmax.f32 %v1002, -20.0
    %v1129 = vmax.f32 %v1008, -20.0
    %v1130 = vmax.f32 %v1014, -20.0
    %v1131 = vmax.f32 %v1020, -20.0
    %v1132 = vmax.f32 %v1026, -20.0
    %v1133 = vmax.f32 %v1032, -20.0
    %v1134 = vmax.f32 %v1038, -20.0
    %v1135 = vmax.f32 %v1044, -20.0
    %v1136 = vmax.f32 %v1050, -20.0
    %v1137 = vmax.f32 %v1056, -20.0
    %v1138 = vmax.f32 %v1062, -20.0
    %v1139 = vmax.f32 %v1068, -20.0
    %v1140 = vmax.f32 %v1074, -20.0
    %v1141 = vmax.f32 %v1080, -20.0
    %v1142 = vmax.f32 %v1086, -20.0
    %v1143 = vmax.f32 %v1092, -20.0
    %v1144 = vmax.f32 %v1098, -20.0
    %v1145 = vmax.f32 %v1104, -20.0
    %v1146 = vmax.f32 %v1110, -20.0
    %v1147 = vmax.f32 %v1116, -20.0
    %v1148 = vmax.f32 %v1122, -20.0
    %v1149 = vmin.f32 %v1124, 2.0
    %v1150 = vmin.f32 %v1125, 2.0
    %v1151 = vmin.f32 %v1126, 2.0
    %v1152 = vmin.f32 %v1127, 2.0
    %v1153 = vmin.f32 %v1128, 2.0
    %v1154 = vmin.f32 %v1129, 2.0
    %v1155 = vmin.f32 %v1130, 2.0
    %v1156 = vmin.f32 %v1131, 2.0
    %v1157 = vmin.f32 %v1132, 2.0
    %v1158 = vmin.f32 %v1133, 2.0
    %v1159 = vmin.f32 %v1134, 2.0
    %v1160 = vmin.f32 %v1135, 2.0
    %v1161 = vmin.f32 %v1136, 2.0
    %v1162 = vmin.f32 %v1137, 2.0
    %v1163 = vmin.f32 %v1138, 2.0
    %v1164 = vmin.f32 %v1139, 2.0
    %v1165 = vmin.f32 %v1140, 2.0
    %v1166 = vmin.f32 %v1141, 2.0
    %v1167 = vmin.f32 %v1142, 2.0
    %v1168 = vmin.f32 %v1143, 2.0
    %v1169 = vmin.f32 %v1144, 2.0
    %v1170 = vmin.f32 %v1145, 2.0
    %v1171 = vmin.f32 %v1146, 2.0
    %v1172 = vmin.f32 %v1147, 2.0
    %v1173 = vmin.f32 %v1148, 2.0
    %v1174 = vmul.f32 %v1149, 1.442695
    %v1175 = vpow.pop %v1174
    %v1176 = vmul.f32 %v1150, 1.442695
    %v1177 = vpow.pop %v1176
    %v1178 = vmul.f32 %v1151, 1.442695
    %v1179 = vpow.pop %v1178
    %v1180 = vmul.f32 %v1152, 1.442695
    %v1181 = vpow.pop %v1180
    %v1182 = vmul.f32 %v1153, 1.442695
    %v1183 = vpow.pop %v1182
    %v1184 = vmul.f32 %v1154, 1.442695
    %v1185 = vpow.pop %v1184
    %v1186 = vmul.f32 %v1155, 1.442695
    %v1187 = vpow.pop %v1186
    %v1188 = vmul.f32 %v1156, 1.442695
    %v1189 = vpow.pop %v1188
    %v1190 = vmul.f32 %v1157, 1.442695
    %v1191 = vpow.pop %v1190
    %v1192 = vmul.f32 %v1158, 1.442695
    %v1193 = vpow.pop %v1192
    %v1194 = vmul.f32 %v1159, 1.442695
    %v1195 = vpow.pop %v1194
    %v1196 = vmul.f32 %v1160, 1.442695
    %v1197 = vpow.pop %v1196
    %v1198 = vmul.f32 %v1161, 1.442695
    %v1199 = vpow.pop %v1198
    %v1200 = vmul.f32 %v1162, 1.442695
    %v1201 = vpow.pop %v1200
    %v1202 = vmul.f32 %v1163, 1.442695
    %v1203 = vpow.pop %v1202
    %v1204 = vmul.f32 %v1164, 1.442695
    %v1205 = vpow.pop %v1204
    %v1206 = vmul.f32 %v1165, 1.442695
    %v1207 = vpow.pop %v1206
    %v1208 = vmul.f32 %v1166, 1.442695
    %v1209 = vpow.pop %v1208
    %v1210 = vmul.f32 %v1167, 1.442695
    %v1211 = vpow.pop %v1210
    %v1212 = vmul.f32 %v1168, 1.442695
    %v1213 = vpow.pop %v1212
    %v1214 = vmul.f32 %v1169, 1.442695
    %v1215 = vpow.pop %v1214
    %v1216 = vmul.f32 %v1170, 1.442695
    %v1217 = vpow.pop %v1216
    %v1218 = vmul.f32 %v1171, 1.442695
    %v1219 = vpow.pop %v1218
    %v1220 = vmul.f32 %v1172, 1.442695
    %v1221 = vpow.pop %v1220
    %v1222 = vmul.f32 %v1173, 1.442695
    %v1223 = vpow.pop %v1222
    %v1224 = vmul.f32 %v1175, %v110
    %v1225 = vmul.f32 %v1177, %v111
    %v1226 = vmul.f32 %v1179, %v112
    %v1227 = vmul.f32 %v1181, %v113
    %v1228 = vmul.f32 %v1183, %v114
    %v1229 = vmul.f32 %v1185, %v115
    %v1230 = vmul.f32 %v1187, %v116
    %v1231 = vmul.f32 %v1189, %v117
    %v1232 = vmul.f32 %v1191, %v118
    %v1233 = vmul.f32 %v1193, %v119
    %v1234 = vmul.f32 %v1195, %v120
    %v1235 = vmul.f32 %v1197, %v121
    %v1236 = vmul.f32 %v1199, %v122
    %v1237 = vmul.f32 %v1201, %v123
    %v1238 = vmul.f32 %v1203, %v124
    %v1239 = vmul.f32 %v1205, %v125
    %v1240 = vmul.f32 %v1207, %v126
    %v1241 = vmul.f32 %v1209, %v127
    %v1242 = vmul.f32 %v1211, %v128
    %v1243 = vmul.f32 %v1213, %v129
    %v1244 = vmul.f32 %v1215, %v130
    %v1245 = vmul.f32 %v1217, %v131
    %v1246 = vmul.f32 %v1219, %v132
    %v1247 = vmul.f32 %v1221, %v133
    %v1248 = vmul.f32 %v1223, %v134
    %v1249 = vadd.f32 %v976, %v1224
    %v1250 = vadd.f32 %v982, %v1225
    %v1251 = vadd.f32 %v988, %v1226
    %v1252 = vadd.f32 %v994, %v1227
    %v1253 = vadd.f32 %v1000, %v1228
    %v1254 = vadd.f32 %v1006, %v1229
    %v1255 = vadd.f32 %v1012, %v1230
    %v1256 = vadd.f32 %v1018, %v1231
    %v1257 = vadd.f32 %v1024, %v1232
    %v1258 = vadd.f32 %v1030, %v1233
    %v1259 = vadd.f32 %v1036, %v1234
    %v1260 = vadd.f32 %v1042, %v1235
    %v1261 = vadd.f32 %v1048, %v1236
    %v1262 = vadd.f32 %v1054, %v1237
    %v1263 = vadd.f32 %v1060, %v1238
    %v1264 = vadd.f32 %v1066, %v1239
    %v1265 = vadd.f32 %v1072, %v1240
    %v1266 = vadd.f32 %v1078, %v1241
    %v1267 = vadd.f32 %v1084, %v1242
    %v1268 = vadd.f32 %v1090, %v1243
    %v1269 = vadd.f32 %v1096, %v1244
    %v1270 = vadd.f32 %v1102, %v1245
    %v1271 = vadd.f32 %v1108, %v1246
    %v1272 = vadd.f32 %v1114, %v1247
    %v1273 = vadd.f32 %v1120, %v1248
    %v1274 = vmul.f32 %v110, -0.5
    %v1275 = vmul.f32 %v111, -0.5
    %v1276 = vmul.f32 %v112, -0.5
    %v1277 = vmul.f32 %v113, -0.5
    %v1278 = vmul.f32 %v114, -0.5
    %v1279 = vmul.f32 %v115, -0.5
    %v1280 = vmul.f32 %v116, -0.5
    %v1281 = vmul.f32 %v117, -0.5
    %v1282 = vmul.f32 %v118, -0.5
    %v1283 = vmul.f32 %v119, -0.5
    %v1284 = vmul.f32 %v120, -0.5
    %v1285 = vmul.f32 %v121, -0.5
    %v1286 = vmul.f32 %v122, -0.5
    %v1287 = vmul.f32 %v123, -0.5
    %v1288 = vmul.f32 %v124, -0.5
    %v1289 = vmul.f32 %v125, -0.5
    %v1290 = vmul.f32 %v126, -0.5
    %v1291 = vmul.f32 %v127, -0.5
    %v1292 = vmul.f32 %v128, -0.5
    %v1293 = vmul.f32 %v129, -0.5
    %v1294 = vmul.f32 %v130, -0.5
    %v1295 = vmul.f32 %v131, -0.5
    %v1296 = vmul.f32 %v132, -0.5
    %v1297 = vmul.f32 %v133, -0.5
    %v1298 = vmul.f32 %v134, -0.5
    %v1299 = vmul.f32 %v1274, %v110
    %v1300 = vmul.f32 %v1275, %v111
    %v1301 = vmul.f32 %v1276, %v112
    %v1302 = vmul.f32 %v1277, %v113
    %v1303 = vmul.f32 %v1278, %v114
    %v1304 = vmul.f32 %v1279, %v115
    %v1305 = vmul.f32 %v1280, %v116
    %v1306 = vmul.f32 %v1281, %v117
    %v1307 = vmul.f32 %v1282, %v118
    %v1308 = vmul.f32 %v1283, %v119
    %v1309 = vmul.f32 %v1284, %v120
    %v1310 = vmul.f32 %v1285, %v121
    %v1311 = vmul.f32 %v1286, %v122
    %v1312 = vmul.f32 %v1287, %v123
    %v1313 = vmul.f32 %v1288, %v124
    %v1314 = vmul.f32 %v1289, %v125
    %v1315 = vmul.f32 %v1290, %v126
    %v1316 = vmul.f32 %v1291, %v127
    %v1317 = vmul.f32 %v1292, %v128
    %v1318 = vmul.f32 %v1293, %v129
    %v1319 = vmul.f32 %v1294, %v130
    %v1320 = vmul.f32 %v1295, %v131
    %v1321 = vmul.f32 %v1296, %v132
    %v1322 = vmul.f32 %v1297, %v133
    %v1323 = vmul.f32 %v1298, %v134
    %v1324 = vsub.f32 %v1299, %v1149
    %v1325 = vsub.f32 %v1300, %v1150
    %v1326 = vsub.f32 %v1301, %v1151
    %v1327 = vsub.f32 %v1302, %v1152
    %v1328 = vsub.f32 %v1303, %v1153
    %v1329 = vsub.f32 %v1304, %v1154
    %v1330 = vsub.f32 %v1305, %v1155
    %v1331 = vsub.f32 %v1306, %v1156
    %v1332 = vsub.f32 %v1307, %v1157
    %v1333 = vsub.f32 %v1308, %v1158
    %v1334 = vsub.f32 %v1309, %v1159
    %v1335 = vsub.f32 %v1310, %v1160
    %v1336 = vsub.f32 %v1311, %v1161
    %v1337 = vsub.f32 %v1312, %v1162
    %v1338 = vsub.f32 %v1313, %v1163
    %v1339 = vsub.f32 %v1314, %v1164
    %v1340 = vsub.f32 %v1315, %v1165
    %v1341 = vsub.f32 %v1316, %v1166
    %v1342 = vsub.f32 %v1317, %v1167
    %v1343 = vsub.f32 %v1318, %v1168
    %v1344 = vsub.f32 %v1319, %v1169
    %v1345 = vsub.f32 %v1320, %v1170
    %v1346 = vsub.f32 %v1321, %v1171
    %v1347 = vsub.f32 %v1322, %v1172
    %v1348 = vsub.f32 %v1323, %v1173
    %1349 = vadd.xlane.f32.xlu0 %v1324
    %v1350 = vpop.xlane.xlu0 %1349
    %1351 = vadd.xlane.f32.xlu0 %v1325
    %v1352 = vpop.xlane.xlu0 %1351
    %1353 = vadd.xlane.f32.xlu0 %v1326
    %v1354 = vpop.xlane.xlu0 %1353
    %1355 = vadd.xlane.f32.xlu0 %v1327
    %v1356 = vpop.xlane.xlu0 %1355
    %1357 = vadd.xlane.f32.xlu0 %v1328
    %v1358 = vpop.xlane.xlu0 %1357
    %1359 = vadd.xlane.f32.xlu0 %v1329
    %v1360 = vpop.xlane.xlu0 %1359
    %1361 = vadd.xlane.f32.xlu0 %v1330
    %v1362 = vpop.xlane.xlu0 %1361
    %1363 = vadd.xlane.f32.xlu0 %v1331
    %v1364 = vpop.xlane.xlu0 %1363
    %1365 = vadd.xlane.f32.xlu0 %v1332
    %v1366 = vpop.xlane.xlu0 %1365
    %1367 = vadd.xlane.f32.xlu0 %v1333
    %v1368 = vpop.xlane.xlu0 %1367
    %1369 = vadd.xlane.f32.xlu0 %v1334
    %v1370 = vpop.xlane.xlu0 %1369
    %1371 = vadd.xlane.f32.xlu0 %v1335
    %v1372 = vpop.xlane.xlu0 %1371
    %1373 = vadd.xlane.f32.xlu0 %v1336
    %v1374 = vpop.xlane.xlu0 %1373
    %1375 = vadd.xlane.f32.xlu0 %v1337
    %v1376 = vpop.xlane.xlu0 %1375
    %1377 = vadd.xlane.f32.xlu0 %v1338
    %v1378 = vpop.xlane.xlu0 %1377
    %1379 = vadd.xlane.f32.xlu0 %v1339
    %v1380 = vpop.xlane.xlu0 %1379
    %1381 = vadd.xlane.f32.xlu0 %v1340
    %v1382 = vpop.xlane.xlu0 %1381
    %1383 = vadd.xlane.f32.xlu0 %v1341
    %v1384 = vpop.xlane.xlu0 %1383
    %1385 = vadd.xlane.f32.xlu0 %v1342
    %v1386 = vpop.xlane.xlu0 %1385
    %1387 = vadd.xlane.f32.xlu0 %v1343
    %v1388 = vpop.xlane.xlu0 %1387
    %1389 = vadd.xlane.f32.xlu0 %v1344
    %v1390 = vpop.xlane.xlu0 %1389
    %1391 = vadd.xlane.f32.xlu0 %v1345
    %v1392 = vpop.xlane.xlu0 %1391
    %1393 = vadd.xlane.f32.xlu0 %v1346
    %v1394 = vpop.xlane.xlu0 %1393
    %1395 = vadd.xlane.f32.xlu0 %v1347
    %v1396 = vpop.xlane.xlu0 %1395
    %1397 = vadd.xlane.f32.xlu0 %v1348
    %v1398 = vpop.xlane.xlu0 %1397
    %v1399 = vsub.f32 %v1350, 3.675754
    %v1400 = vsub.f32 %v1352, 3.675754
    %v1401 = vsub.f32 %v1354, 3.675754
    %v1402 = vsub.f32 %v1356, 3.675754
    %v1403 = vsub.f32 %v1358, 3.675754
    %v1404 = vsub.f32 %v1360, 3.675754
    %v1405 = vsub.f32 %v1362, 3.675754
    %v1406 = vsub.f32 %v1364, 3.675754
    %v1407 = vsub.f32 %v1366, 3.675754
    %v1408 = vsub.f32 %v1368, 3.675754
    %v1409 = vsub.f32 %v1370, 3.675754
    %v1410 = vsub.f32 %v1372, 3.675754
    %v1411 = vsub.f32 %v1374, 3.675754
    %v1412 = vsub.f32 %v1376, 3.675754
    %v1413 = vsub.f32 %v1378, 3.675754
    %v1414 = vsub.f32 %v1380, 3.675754
    %v1415 = vsub.f32 %v1382, 3.675754
    %v1416 = vsub.f32 %v1384, 3.675754
    %v1417 = vsub.f32 %v1386, 3.675754
    %v1418 = vsub.f32 %v1388, 3.675754
    %v1419 = vsub.f32 %v1390, 3.675754
    %v1420 = vsub.f32 %v1392, 3.675754
    %v1421 = vsub.f32 %v1394, 3.675754
    %v1422 = vsub.f32 %v1396, 3.675754
    %v1423 = vsub.f32 %v1398, 3.675754
    %v1424 = vmul.f32 %v1249, -2.0
    %v1425 = vmul.f32 %v1250, -2.0
    %v1426 = vmul.f32 %v1251, -2.0
    %v1427 = vmul.f32 %v1252, -2.0
    %v1428 = vmul.f32 %v1253, -2.0
    %v1429 = vmul.f32 %v1254, -2.0
    %v1430 = vmul.f32 %v1255, -2.0
    %v1431 = vmul.f32 %v1256, -2.0
    %v1432 = vmul.f32 %v1257, -2.0
    %v1433 = vmul.f32 %v1258, -2.0
    %v1434 = vmul.f32 %v1259, -2.0
    %v1435 = vmul.f32 %v1260, -2.0
    %v1436 = vmul.f32 %v1261, -2.0
    %v1437 = vmul.f32 %v1262, -2.0
    %v1438 = vmul.f32 %v1263, -2.0
    %v1439 = vmul.f32 %v1264, -2.0
    %v1440 = vmul.f32 %v1265, -2.0
    %v1441 = vmul.f32 %v1266, -2.0
    %v1442 = vmul.f32 %v1267, -2.0
    %v1443 = vmul.f32 %v1268, -2.0
    %v1444 = vmul.f32 %v1269, -2.0
    %v1445 = vmul.f32 %v1270, -2.0
    %v1446 = vmul.f32 %v1271, -2.0
    %v1447 = vmul.f32 %v1272, -2.0
    %v1448 = vmul.f32 %v1273, -2.0
    %v1449 = vmax.f32 %v1424, 0.0
    %v1450 = vmax.f32 %v1425, 0.0
    %v1451 = vmax.f32 %v1426, 0.0
    %v1452 = vmax.f32 %v1427, 0.0
    %v1453 = vmax.f32 %v1428, 0.0
    %v1454 = vmax.f32 %v1429, 0.0
    %v1455 = vmax.f32 %v1430, 0.0
    %v1456 = vmax.f32 %v1431, 0.0
    %v1457 = vmax.f32 %v1432, 0.0
    %v1458 = vmax.f32 %v1433, 0.0
    %v1459 = vmax.f32 %v1434, 0.0
    %v1460 = vmax.f32 %v1435, 0.0
    %v1461 = vmax.f32 %v1436, 0.0
    %v1462 = vmax.f32 %v1437, 0.0
    %v1463 = vmax.f32 %v1438, 0.0
    %v1464 = vmax.f32 %v1439, 0.0
    %v1465 = vmax.f32 %v1440, 0.0
    %v1466 = vmax.f32 %v1441, 0.0
    %v1467 = vmax.f32 %v1442, 0.0
    %v1468 = vmax.f32 %v1443, 0.0
    %v1469 = vmax.f32 %v1444, 0.0
    %v1470 = vmax.f32 %v1445, 0.0
    %v1471 = vmax.f32 %v1446, 0.0
    %v1472 = vmax.f32 %v1447, 0.0
    %v1473 = vmax.f32 %v1448, 0.0
    %v1474 = vand.u32 2147483647, %v1424
    %v1475 = vand.u32 2147483647, %v1425
    %v1476 = vand.u32 2147483647, %v1426
    %v1477 = vand.u32 2147483647, %v1427
    %v1478 = vand.u32 2147483647, %v1428
    %v1479 = vand.u32 2147483647, %v1429
    %v1480 = vand.u32 2147483647, %v1430
    %v1481 = vand.u32 2147483647, %v1431
    %v1482 = vand.u32 2147483647, %v1432
    %v1483 = vand.u32 2147483647, %v1433
    %v1484 = vand.u32 2147483647, %v1434
    %v1485 = vand.u32 2147483647, %v1435
    %v1486 = vand.u32 2147483647, %v1436
    %v1487 = vand.u32 2147483647, %v1437
    %v1488 = vand.u32 2147483647, %v1438
    %v1489 = vand.u32 2147483647, %v1439
    %v1490 = vand.u32 2147483647, %v1440
    %v1491 = vand.u32 2147483647, %v1441
    %v1492 = vand.u32 2147483647, %v1442
    %v1493 = vand.u32 2147483647, %v1443
    %v1494 = vand.u32 2147483647, %v1444
    %v1495 = vand.u32 2147483647, %v1445
    %v1496 = vand.u32 2147483647, %v1446
    %v1497 = vand.u32 2147483647, %v1447
    %v1498 = vand.u32 2147483647, %v1448
    %v1499 = vsub.f32 0.0, %v1474
    %v1500 = vsub.f32 0.0, %v1475
    %v1501 = vsub.f32 0.0, %v1476
    %v1502 = vsub.f32 0.0, %v1477
    %v1503 = vsub.f32 0.0, %v1478
    %v1504 = vsub.f32 0.0, %v1479
    %v1505 = vsub.f32 0.0, %v1480
    %v1506 = vsub.f32 0.0, %v1481
    %v1507 = vsub.f32 0.0, %v1482
    %v1508 = vsub.f32 0.0, %v1483
    %v1509 = vsub.f32 0.0, %v1484
    %v1510 = vsub.f32 0.0, %v1485
    %v1511 = vsub.f32 0.0, %v1486
    %v1512 = vsub.f32 0.0, %v1487
    %v1513 = vsub.f32 0.0, %v1488
    %v1514 = vsub.f32 0.0, %v1489
    %v1515 = vsub.f32 0.0, %v1490
    %v1516 = vsub.f32 0.0, %v1491
    %v1517 = vsub.f32 0.0, %v1492
    %v1518 = vsub.f32 0.0, %v1493
    %v1519 = vsub.f32 0.0, %v1494
    %v1520 = vsub.f32 0.0, %v1495
    %v1521 = vsub.f32 0.0, %v1496
    %v1522 = vsub.f32 0.0, %v1497
    %v1523 = vsub.f32 0.0, %v1498
    %v1524 = vmul.f32 %v1499, 1.442695
    %v1525 = vpow.pop %v1524
    %v1526 = vmul.f32 %v1500, 1.442695
    %v1527 = vpow.pop %v1526
    %v1528 = vmul.f32 %v1501, 1.442695
    %v1529 = vpow.pop %v1528
    %v1530 = vmul.f32 %v1502, 1.442695
    %v1531 = vpow.pop %v1530
    %v1532 = vmul.f32 %v1503, 1.442695
    %v1533 = vpow.pop %v1532
    %v1534 = vmul.f32 %v1504, 1.442695
    %v1535 = vpow.pop %v1534
    %v1536 = vmul.f32 %v1505, 1.442695
    %v1537 = vpow.pop %v1536
    %v1538 = vmul.f32 %v1506, 1.442695
    %v1539 = vpow.pop %v1538
    %v1540 = vmul.f32 %v1507, 1.442695
    %v1541 = vpow.pop %v1540
    %v1542 = vmul.f32 %v1508, 1.442695
    %v1543 = vpow.pop %v1542
    %v1544 = vmul.f32 %v1509, 1.442695
    %v1545 = vpow.pop %v1544
    %v1546 = vmul.f32 %v1510, 1.442695
    %v1547 = vpow.pop %v1546
    %v1548 = vmul.f32 %v1511, 1.442695
    %v1549 = vpow.pop %v1548
    %v1550 = vmul.f32 %v1512, 1.442695
    %v1551 = vpow.pop %v1550
    %v1552 = vmul.f32 %v1513, 1.442695
    %v1553 = vpow.pop %v1552
    %v1554 = vmul.f32 %v1514, 1.442695
    %v1555 = vpow.pop %v1554
    %v1556 = vmul.f32 %v1515, 1.442695
    %v1557 = vpow.pop %v1556
    %v1558 = vmul.f32 %v1516, 1.442695
    %v1559 = vpow.pop %v1558
    %v1560 = vmul.f32 %v1517, 1.442695
    %v1561 = vpow.pop %v1560
    %v1562 = vmul.f32 %v1518, 1.442695
    %v1563 = vpow.pop %v1562
    %v1564 = vmul.f32 %v1519, 1.442695
    %v1565 = vpow.pop %v1564
    %v1566 = vmul.f32 %v1520, 1.442695
    %v1567 = vpow.pop %v1566
    %v1568 = vmul.f32 %v1521, 1.442695
    %v1569 = vpow.pop %v1568
    %v1570 = vmul.f32 %v1522, 1.442695
    %v1571 = vpow.pop %v1570
    %v1572 = vmul.f32 %v1523, 1.442695
    %v1573 = vpow.pop %v1572
    %v1574 = vadd.f32 %v1525, 1.0
    %v1575 = vlog2.pop %v1574
    %v1576 = vmul.f32 %v1575, 0.6931472
    %v1577 = vmul.f32 -0.5, %v1525
    %v1578 = vadd.f32 %v1577, 1.0
    %v1579 = vmul.f32 %v1578, %v1525
    %v1580 = vand.u32 2147483647, %v1525
    %vm1581 = vcmp.lt.f32.partialorder %v1580, 0.0004427343
    %v1582 = vsel %vm1581, %v1579, %v1576
    %v1583 = vadd.f32 %v1527, 1.0
    %v1584 = vlog2.pop %v1583
    %v1585 = vmul.f32 %v1584, 0.6931472
    %v1586 = vmul.f32 -0.5, %v1527
    %v1587 = vadd.f32 %v1586, 1.0
    %v1588 = vmul.f32 %v1587, %v1527
    %v1589 = vand.u32 2147483647, %v1527
    %vm1590 = vcmp.lt.f32.partialorder %v1589, 0.0004427343
    %v1591 = vsel %vm1590, %v1588, %v1585
    %v1592 = vadd.f32 %v1529, 1.0
    %v1593 = vlog2.pop %v1592
    %v1594 = vmul.f32 %v1593, 0.6931472
    %v1595 = vmul.f32 -0.5, %v1529
    %v1596 = vadd.f32 %v1595, 1.0
    %v1597 = vmul.f32 %v1596, %v1529
    %v1598 = vand.u32 2147483647, %v1529
    %vm1599 = vcmp.lt.f32.partialorder %v1598, 0.0004427343
    %v1600 = vsel %vm1599, %v1597, %v1594
    %v1601 = vadd.f32 %v1531, 1.0
    %v1602 = vlog2.pop %v1601
    %v1603 = vmul.f32 %v1602, 0.6931472
    %v1604 = vmul.f32 -0.5, %v1531
    %v1605 = vadd.f32 %v1604, 1.0
    %v1606 = vmul.f32 %v1605, %v1531
    %v1607 = vand.u32 2147483647, %v1531
    %vm1608 = vcmp.lt.f32.partialorder %v1607, 0.0004427343
    %v1609 = vsel %vm1608, %v1606, %v1603
    %v1610 = vadd.f32 %v1533, 1.0
    %v1611 = vlog2.pop %v1610
    %v1612 = vmul.f32 %v1611, 0.6931472
    %v1613 = vmul.f32 -0.5, %v1533
    %v1614 = vadd.f32 %v1613, 1.0
    %v1615 = vmul.f32 %v1614, %v1533
    %v1616 = vand.u32 2147483647, %v1533
    %vm1617 = vcmp.lt.f32.partialorder %v1616, 0.0004427343
    %v1618 = vsel %vm1617, %v1615, %v1612
    %v1619 = vadd.f32 %v1535, 1.0
    %v1620 = vlog2.pop %v1619
    %v1621 = vmul.f32 %v1620, 0.6931472
    %v1622 = vmul.f32 -0.5, %v1535
    %v1623 = vadd.f32 %v1622, 1.0
    %v1624 = vmul.f32 %v1623, %v1535
    %v1625 = vand.u32 2147483647, %v1535
    %vm1626 = vcmp.lt.f32.partialorder %v1625, 0.0004427343
    %v1627 = vsel %vm1626, %v1624, %v1621
    %v1628 = vadd.f32 %v1537, 1.0
    %v1629 = vlog2.pop %v1628
    %v1630 = vmul.f32 %v1629, 0.6931472
    %v1631 = vmul.f32 -0.5, %v1537
    %v1632 = vadd.f32 %v1631, 1.0
    %v1633 = vmul.f32 %v1632, %v1537
    %v1634 = vand.u32 2147483647, %v1537
    %vm1635 = vcmp.lt.f32.partialorder %v1634, 0.0004427343
    %v1636 = vsel %vm1635, %v1633, %v1630
    %v1637 = vadd.f32 %v1539, 1.0
    %v1638 = vlog2.pop %v1637
    %v1639 = vmul.f32 %v1638, 0.6931472
    %v1640 = vmul.f32 -0.5, %v1539
    %v1641 = vadd.f32 %v1640, 1.0
    %v1642 = vmul.f32 %v1641, %v1539
    %v1643 = vand.u32 2147483647, %v1539
    %vm1644 = vcmp.lt.f32.partialorder %v1643, 0.0004427343
    %v1645 = vsel %vm1644, %v1642, %v1639
    %v1646 = vadd.f32 %v1541, 1.0
    %v1647 = vlog2.pop %v1646
    %v1648 = vmul.f32 %v1647, 0.6931472
    %v1649 = vmul.f32 -0.5, %v1541
    %v1650 = vadd.f32 %v1649, 1.0
    %v1651 = vmul.f32 %v1650, %v1541
    %v1652 = vand.u32 2147483647, %v1541
    %vm1653 = vcmp.lt.f32.partialorder %v1652, 0.0004427343
    %v1654 = vsel %vm1653, %v1651, %v1648
    %v1655 = vadd.f32 %v1543, 1.0
    %v1656 = vlog2.pop %v1655
    %v1657 = vmul.f32 %v1656, 0.6931472
    %v1658 = vmul.f32 -0.5, %v1543
    %v1659 = vadd.f32 %v1658, 1.0
    %v1660 = vmul.f32 %v1659, %v1543
    %v1661 = vand.u32 2147483647, %v1543
    %vm1662 = vcmp.lt.f32.partialorder %v1661, 0.0004427343
    %v1663 = vsel %vm1662, %v1660, %v1657
    %v1664 = vadd.f32 %v1545, 1.0
    %v1665 = vlog2.pop %v1664
    %v1666 = vmul.f32 %v1665, 0.6931472
    %v1667 = vmul.f32 -0.5, %v1545
    %v1668 = vadd.f32 %v1667, 1.0
    %v1669 = vmul.f32 %v1668, %v1545
    %v1670 = vand.u32 2147483647, %v1545
    %vm1671 = vcmp.lt.f32.partialorder %v1670, 0.0004427343
    %v1672 = vsel %vm1671, %v1669, %v1666
    %v1673 = vadd.f32 %v1547, 1.0
    %v1674 = vlog2.pop %v1673
    %v1675 = vmul.f32 %v1674, 0.6931472
    %v1676 = vmul.f32 -0.5, %v1547
    %v1677 = vadd.f32 %v1676, 1.0
    %v1678 = vmul.f32 %v1677, %v1547
    %v1679 = vand.u32 2147483647, %v1547
    %vm1680 = vcmp.lt.f32.partialorder %v1679, 0.0004427343
    %v1681 = vsel %vm1680, %v1678, %v1675
    %v1682 = vadd.f32 %v1549, 1.0
    %v1683 = vlog2.pop %v1682
    %v1684 = vmul.f32 %v1683, 0.6931472
    %v1685 = vmul.f32 -0.5, %v1549
    %v1686 = vadd.f32 %v1685, 1.0
    %v1687 = vmul.f32 %v1686, %v1549
    %v1688 = vand.u32 2147483647, %v1549
    %vm1689 = vcmp.lt.f32.partialorder %v1688, 0.0004427343
    %v1690 = vsel %vm1689, %v1687, %v1684
    %v1691 = vadd.f32 %v1551, 1.0
    %v1692 = vlog2.pop %v1691
    %v1693 = vmul.f32 %v1692, 0.6931472
    %v1694 = vmul.f32 -0.5, %v1551
    %v1695 = vadd.f32 %v1694, 1.0
    %v1696 = vmul.f32 %v1695, %v1551
    %v1697 = vand.u32 2147483647, %v1551
    %vm1698 = vcmp.lt.f32.partialorder %v1697, 0.0004427343
    %v1699 = vsel %vm1698, %v1696, %v1693
    %v1700 = vadd.f32 %v1553, 1.0
    %v1701 = vlog2.pop %v1700
    %v1702 = vmul.f32 %v1701, 0.6931472
    %v1703 = vmul.f32 -0.5, %v1553
    %v1704 = vadd.f32 %v1703, 1.0
    %v1705 = vmul.f32 %v1704, %v1553
    %v1706 = vand.u32 2147483647, %v1553
    %vm1707 = vcmp.lt.f32.partialorder %v1706, 0.0004427343
    %v1708 = vsel %vm1707, %v1705, %v1702
    %v1709 = vadd.f32 %v1555, 1.0
    %v1710 = vlog2.pop %v1709
    %v1711 = vmul.f32 %v1710, 0.6931472
    %v1712 = vmul.f32 -0.5, %v1555
    %v1713 = vadd.f32 %v1712, 1.0
    %v1714 = vmul.f32 %v1713, %v1555
    %v1715 = vand.u32 2147483647, %v1555
    %vm1716 = vcmp.lt.f32.partialorder %v1715, 0.0004427343
    %v1717 = vsel %vm1716, %v1714, %v1711
    %v1718 = vadd.f32 %v1557, 1.0
    %v1719 = vlog2.pop %v1718
    %v1720 = vmul.f32 %v1719, 0.6931472
    %v1721 = vmul.f32 -0.5, %v1557
    %v1722 = vadd.f32 %v1721, 1.0
    %v1723 = vmul.f32 %v1722, %v1557
    %v1724 = vand.u32 2147483647, %v1557
    %vm1725 = vcmp.lt.f32.partialorder %v1724, 0.0004427343
    %v1726 = vsel %vm1725, %v1723, %v1720
    %v1727 = vadd.f32 %v1559, 1.0
    %v1728 = vlog2.pop %v1727
    %v1729 = vmul.f32 %v1728, 0.6931472
    %v1730 = vmul.f32 -0.5, %v1559
    %v1731 = vadd.f32 %v1730, 1.0
    %v1732 = vmul.f32 %v1731, %v1559
    %v1733 = vand.u32 2147483647, %v1559
    %vm1734 = vcmp.lt.f32.partialorder %v1733, 0.0004427343
    %v1735 = vsel %vm1734, %v1732, %v1729
    %v1736 = vadd.f32 %v1561, 1.0
    %v1737 = vlog2.pop %v1736
    %v1738 = vmul.f32 %v1737, 0.6931472
    %v1739 = vmul.f32 -0.5, %v1561
    %v1740 = vadd.f32 %v1739, 1.0
    %v1741 = vmul.f32 %v1740, %v1561
    %v1742 = vand.u32 2147483647, %v1561
    %vm1743 = vcmp.lt.f32.partialorder %v1742, 0.0004427343
    %v1744 = vsel %vm1743, %v1741, %v1738
    %v1745 = vadd.f32 %v1563, 1.0
    %v1746 = vlog2.pop %v1745
    %v1747 = vmul.f32 %v1746, 0.6931472
    %v1748 = vmul.f32 -0.5, %v1563
    %v1749 = vadd.f32 %v1748, 1.0
    %v1750 = vmul.f32 %v1749, %v1563
    %v1751 = vand.u32 2147483647, %v1563
    %vm1752 = vcmp.lt.f32.partialorder %v1751, 0.0004427343
    %v1753 = vsel %vm1752, %v1750, %v1747
    %v1754 = vadd.f32 %v1565, 1.0
    %v1755 = vlog2.pop %v1754
    %v1756 = vmul.f32 %v1755, 0.6931472
    %v1757 = vmul.f32 -0.5, %v1565
    %v1758 = vadd.f32 %v1757, 1.0
    %v1759 = vmul.f32 %v1758, %v1565
    %v1760 = vand.u32 2147483647, %v1565
    %vm1761 = vcmp.lt.f32.partialorder %v1760, 0.0004427343
    %v1762 = vsel %vm1761, %v1759, %v1756
    %v1763 = vadd.f32 %v1567, 1.0
    %v1764 = vlog2.pop %v1763
    %v1765 = vmul.f32 %v1764, 0.6931472
    %v1766 = vmul.f32 -0.5, %v1567
    %v1767 = vadd.f32 %v1766, 1.0
    %v1768 = vmul.f32 %v1767, %v1567
    %v1769 = vand.u32 2147483647, %v1567
    %vm1770 = vcmp.lt.f32.partialorder %v1769, 0.0004427343
    %v1771 = vsel %vm1770, %v1768, %v1765
    %v1772 = vadd.f32 %v1569, 1.0
    %v1773 = vlog2.pop %v1772
    %v1774 = vmul.f32 %v1773, 0.6931472
    %v1775 = vmul.f32 -0.5, %v1569
    %v1776 = vadd.f32 %v1775, 1.0
    %v1777 = vmul.f32 %v1776, %v1569
    %v1778 = vand.u32 2147483647, %v1569
    %vm1779 = vcmp.lt.f32.partialorder %v1778, 0.0004427343
    %v1780 = vsel %vm1779, %v1777, %v1774
    %v1781 = vadd.f32 %v1571, 1.0
    %v1782 = vlog2.pop %v1781
    %v1783 = vmul.f32 %v1782, 0.6931472
    %v1784 = vmul.f32 -0.5, %v1571
    %v1785 = vadd.f32 %v1784, 1.0
    %v1786 = vmul.f32 %v1785, %v1571
    %v1787 = vand.u32 2147483647, %v1571
    %vm1788 = vcmp.lt.f32.partialorder %v1787, 0.0004427343
    %v1789 = vsel %vm1788, %v1786, %v1783
    %v1790 = vadd.f32 %v1573, 1.0
    %v1791 = vlog2.pop %v1790
    %v1792 = vmul.f32 %v1791, 0.6931472
    %v1793 = vmul.f32 -0.5, %v1573
    %v1794 = vadd.f32 %v1793, 1.0
    %v1795 = vmul.f32 %v1794, %v1573
    %v1796 = vand.u32 2147483647, %v1573
    %vm1797 = vcmp.lt.f32.partialorder %v1796, 0.0004427343
    %v1798 = vsel %vm1797, %v1795, %v1792
    %v1799 = vadd.f32 %v1449, %v1582
    %v1800 = vadd.f32 %v1450, %v1591
    %v1801 = vadd.f32 %v1451, %v1600
    %v1802 = vadd.f32 %v1452, %v1609
    %v1803 = vadd.f32 %v1453, %v1618
    %v1804 = vadd.f32 %v1454, %v1627
    %v1805 = vadd.f32 %v1455, %v1636
    %v1806 = vadd.f32 %v1456, %v1645
    %v1807 = vadd.f32 %v1457, %v1654
    %v1808 = vadd.f32 %v1458, %v1663
    %v1809 = vadd.f32 %v1459, %v1672
    %v1810 = vadd.f32 %v1460, %v1681
    %v1811 = vadd.f32 %v1461, %v1690
    %v1812 = vadd.f32 %v1462, %v1699
    %v1813 = vadd.f32 %v1463, %v1708
    %v1814 = vadd.f32 %v1464, %v1717
    %v1815 = vadd.f32 %v1465, %v1726
    %v1816 = vadd.f32 %v1466, %v1735
    %v1817 = vadd.f32 %v1467, %v1744
    %v1818 = vadd.f32 %v1468, %v1753
    %v1819 = vadd.f32 %v1469, %v1762
    %v1820 = vadd.f32 %v1470, %v1771
    %v1821 = vadd.f32 %v1471, %v1780
    %v1822 = vadd.f32 %v1472, %v1789
    %v1823 = vadd.f32 %v1473, %v1798
    %v1824 = vsub.f32 0.6931472, %v1249
    %v1825 = vsub.f32 0.6931472, %v1250
    %v1826 = vsub.f32 0.6931472, %v1251
    %v1827 = vsub.f32 0.6931472, %v1252
    %v1828 = vsub.f32 0.6931472, %v1253
    %v1829 = vsub.f32 0.6931472, %v1254
    %v1830 = vsub.f32 0.6931472, %v1255
    %v1831 = vsub.f32 0.6931472, %v1256
    %v1832 = vsub.f32 0.6931472, %v1257
    %v1833 = vsub.f32 0.6931472, %v1258
    %v1834 = vsub.f32 0.6931472, %v1259
    %v1835 = vsub.f32 0.6931472, %v1260
    %v1836 = vsub.f32 0.6931472, %v1261
    %v1837 = vsub.f32 0.6931472, %v1262
    %v1838 = vsub.f32 0.6931472, %v1263
    %v1839 = vsub.f32 0.6931472, %v1264
    %v1840 = vsub.f32 0.6931472, %v1265
    %v1841 = vsub.f32 0.6931472, %v1266
    %v1842 = vsub.f32 0.6931472, %v1267
    %v1843 = vsub.f32 0.6931472, %v1268
    %v1844 = vsub.f32 0.6931472, %v1269
    %v1845 = vsub.f32 0.6931472, %v1270
    %v1846 = vsub.f32 0.6931472, %v1271
    %v1847 = vsub.f32 0.6931472, %v1272
    %v1848 = vsub.f32 0.6931472, %v1273
    %v1849 = vsub.f32 %v1824, %v1799
    %v1850 = vsub.f32 %v1825, %v1800
    %v1851 = vsub.f32 %v1826, %v1801
    %v1852 = vsub.f32 %v1827, %v1802
    %v1853 = vsub.f32 %v1828, %v1803
    %v1854 = vsub.f32 %v1829, %v1804
    %v1855 = vsub.f32 %v1830, %v1805
    %v1856 = vsub.f32 %v1831, %v1806
    %v1857 = vsub.f32 %v1832, %v1807
    %v1858 = vsub.f32 %v1833, %v1808
    %v1859 = vsub.f32 %v1834, %v1809
    %v1860 = vsub.f32 %v1835, %v1810
    %v1861 = vsub.f32 %v1836, %v1811
    %v1862 = vsub.f32 %v1837, %v1812
    %v1863 = vsub.f32 %v1838, %v1813
    %v1864 = vsub.f32 %v1839, %v1814
    %v1865 = vsub.f32 %v1840, %v1815
    %v1866 = vsub.f32 %v1841, %v1816
    %v1867 = vsub.f32 %v1842, %v1817
    %v1868 = vsub.f32 %v1843, %v1818
    %v1869 = vsub.f32 %v1844, %v1819
    %v1870 = vsub.f32 %v1845, %v1820
    %v1871 = vsub.f32 %v1846, %v1821
    %v1872 = vsub.f32 %v1847, %v1822
    %v1873 = vsub.f32 %v1848, %v1823
    %v1874 = vmul.f32 %v1849, 2.0
    %v1875 = vmul.f32 %v1850, 2.0
    %v1876 = vmul.f32 %v1851, 2.0
    %v1877 = vmul.f32 %v1852, 2.0
    %v1878 = vmul.f32 %v1853, 2.0
    %v1879 = vmul.f32 %v1854, 2.0
    %v1880 = vmul.f32 %v1855, 2.0
    %v1881 = vmul.f32 %v1856, 2.0
    %v1882 = vmul.f32 %v1857, 2.0
    %v1883 = vmul.f32 %v1858, 2.0
    %v1884 = vmul.f32 %v1859, 2.0
    %v1885 = vmul.f32 %v1860, 2.0
    %v1886 = vmul.f32 %v1861, 2.0
    %v1887 = vmul.f32 %v1862, 2.0
    %v1888 = vmul.f32 %v1863, 2.0
    %v1889 = vmul.f32 %v1864, 2.0
    %v1890 = vmul.f32 %v1865, 2.0
    %v1891 = vmul.f32 %v1866, 2.0
    %v1892 = vmul.f32 %v1867, 2.0
    %v1893 = vmul.f32 %v1868, 2.0
    %v1894 = vmul.f32 %v1869, 2.0
    %v1895 = vmul.f32 %v1870, 2.0
    %v1896 = vmul.f32 %v1871, 2.0
    %v1897 = vmul.f32 %v1872, 2.0
    %v1898 = vmul.f32 %v1873, 2.0
    %1899 = vadd.xlane.f32.xlu0 %v1874
    %v1900 = vpop.xlane.xlu0 %1899
    %1901 = vadd.xlane.f32.xlu0 %v1875
    %v1902 = vpop.xlane.xlu0 %1901
    %1903 = vadd.xlane.f32.xlu0 %v1876
    %v1904 = vpop.xlane.xlu0 %1903
    %1905 = vadd.xlane.f32.xlu0 %v1877
    %v1906 = vpop.xlane.xlu0 %1905
    %1907 = vadd.xlane.f32.xlu0 %v1878
    %v1908 = vpop.xlane.xlu0 %1907
    %1909 = vadd.xlane.f32.xlu0 %v1879
    %v1910 = vpop.xlane.xlu0 %1909
    %1911 = vadd.xlane.f32.xlu0 %v1880
    %v1912 = vpop.xlane.xlu0 %1911
    %1913 = vadd.xlane.f32.xlu0 %v1881
    %v1914 = vpop.xlane.xlu0 %1913
    %1915 = vadd.xlane.f32.xlu0 %v1882
    %v1916 = vpop.xlane.xlu0 %1915
    %1917 = vadd.xlane.f32.xlu0 %v1883
    %v1918 = vpop.xlane.xlu0 %1917
    %1919 = vadd.xlane.f32.xlu0 %v1884
    %v1920 = vpop.xlane.xlu0 %1919
    %1921 = vadd.xlane.f32.xlu0 %v1885
    %v1922 = vpop.xlane.xlu0 %1921
    %1923 = vadd.xlane.f32.xlu0 %v1886
    %v1924 = vpop.xlane.xlu0 %1923
    %1925 = vadd.xlane.f32.xlu0 %v1887
    %v1926 = vpop.xlane.xlu0 %1925
    %1927 = vadd.xlane.f32.xlu0 %v1888
    %v1928 = vpop.xlane.xlu0 %1927
    %1929 = vadd.xlane.f32.xlu0 %v1889
    %v1930 = vpop.xlane.xlu0 %1929
    %1931 = vadd.xlane.f32.xlu0 %v1890
    %v1932 = vpop.xlane.xlu0 %1931
    %1933 = vadd.xlane.f32.xlu0 %v1891
    %v1934 = vpop.xlane.xlu0 %1933
    %1935 = vadd.xlane.f32.xlu0 %v1892
    %v1936 = vpop.xlane.xlu0 %1935
    %1937 = vadd.xlane.f32.xlu0 %v1893
    %v1938 = vpop.xlane.xlu0 %1937
    %1939 = vadd.xlane.f32.xlu0 %v1894
    %v1940 = vpop.xlane.xlu0 %1939
    %1941 = vadd.xlane.f32.xlu0 %v1895
    %v1942 = vpop.xlane.xlu0 %1941
    %1943 = vadd.xlane.f32.xlu0 %v1896
    %v1944 = vpop.xlane.xlu0 %1943
    %1945 = vadd.xlane.f32.xlu0 %v1897
    %v1946 = vpop.xlane.xlu0 %1945
    %1947 = vadd.xlane.f32.xlu0 %v1898
    %v1948 = vpop.xlane.xlu0 %1947
    %v1949 = vsub.f32 %v1399, %v1900
    %v1950 = vsub.f32 %v1400, %v1902
    %v1951 = vsub.f32 %v1401, %v1904
    %v1952 = vsub.f32 %v1402, %v1906
    %v1953 = vsub.f32 %v1403, %v1908
    %v1954 = vsub.f32 %v1404, %v1910
    %v1955 = vsub.f32 %v1405, %v1912
    %v1956 = vsub.f32 %v1406, %v1914
    %v1957 = vsub.f32 %v1407, %v1916
    %v1958 = vsub.f32 %v1408, %v1918
    %v1959 = vsub.f32 %v1409, %v1920
    %v1960 = vsub.f32 %v1410, %v1922
    %v1961 = vsub.f32 %v1411, %v1924
    %v1962 = vsub.f32 %v1412, %v1926
    %v1963 = vsub.f32 %v1413, %v1928
    %v1964 = vsub.f32 %v1414, %v1930
    %v1965 = vsub.f32 %v1415, %v1932
    %v1966 = vsub.f32 %v1416, %v1934
    %v1967 = vsub.f32 %v1417, %v1936
    %v1968 = vsub.f32 %v1418, %v1938
    %v1969 = vsub.f32 %v1419, %v1940
    %v1970 = vsub.f32 %v1420, %v1942
    %v1971 = vsub.f32 %v1421, %v1944
    %v1972 = vsub.f32 %v1422, %v1946
    %v1973 = vsub.f32 %v1423, %v1948
    %v1974 = vtanh.pop %v1249
    %v1975 = vtanh.pop %v1250
    %v1976 = vtanh.pop %v1251
    %v1977 = vtanh.pop %v1252
    %v1978 = vtanh.pop %v1253
    %v1979 = vtanh.pop %v1254
    %v1980 = vtanh.pop %v1255
    %v1981 = vtanh.pop %v1256
    %v1982 = vtanh.pop %v1257
    %v1983 = vtanh.pop %v1258
    %v1984 = vtanh.pop %v1259
    %v1985 = vtanh.pop %v1260
    %v1986 = vtanh.pop %v1261
    %v1987 = vtanh.pop %v1262
    %v1988 = vtanh.pop %v1263
    %v1989 = vtanh.pop %v1264
    %v1990 = vtanh.pop %v1265
    %v1991 = vtanh.pop %v1266
    %v1992 = vtanh.pop %v1267
    %v1993 = vtanh.pop %v1268
    %v1994 = vtanh.pop %v1269
    %v1995 = vtanh.pop %v1270
    %v1996 = vtanh.pop %v1271
    %v1997 = vtanh.pop %v1272
    %v1998 = vtanh.pop %v1273
    %v1999 = vld [vmem:[%s7] sm:$0x1]
    %v2001 = vlaneseq
    %v2002 = vshrl.u32 %v2001, 7
    %v2003 = vsub.s32 0, %v2002
    %v2004 = vrot.slane %v1999, %v2003
    %v2006 = vmul.f32 %v1974, %v2004
    %v2007 = vmul.f32 %v1975, %v2004
    %v2008 = vmul.f32 %v1976, %v2004
    %v2009 = vmul.f32 %v1977, %v2004
    %v2010 = vmul.f32 %v1978, %v2004
    %v2011 = vmul.f32 %v1979, %v2004
    %v2012 = vmul.f32 %v1980, %v2004
    %v2013 = vmul.f32 %v1981, %v2004
    %v2014 = vmul.f32 %v1982, %v2004
    %v2015 = vmul.f32 %v1983, %v2004
    %v2016 = vmul.f32 %v1984, %v2004
    %v2017 = vmul.f32 %v1985, %v2004
    %v2018 = vmul.f32 %v1986, %v2004
    %v2019 = vmul.f32 %v1987, %v2004
    %v2020 = vmul.f32 %v1988, %v2004
    %v2021 = vmul.f32 %v1989, %v2004
    %v2022 = vmul.f32 %v1990, %v2004
    %v2023 = vmul.f32 %v1991, %v2004
    %v2024 = vmul.f32 %v1992, %v2004
    %v2025 = vmul.f32 %v1993, %v2004
    %v2026 = vmul.f32 %v1994, %v2004
    %v2027 = vmul.f32 %v1995, %v2004
    %v2028 = vmul.f32 %v1996, %v2004
    %v2029 = vmul.f32 %v1997, %v2004
    %v2030 = vmul.f32 %v1998, %v2004
    %v2031 = vlaneseq
    %v2032 = vand.u32 %v2031, 127
    %vm2033 = vcmp.eq.s32.totalorder %v2032, 4
    %v2034 = vsel %vm2033, %v1949, %v2006
    %v2035 = vsel %vm2033, %v1950, %v2007
    %v2036 = vsel %vm2033, %v1951, %v2008
    %v2037 = vsel %vm2033, %v1952, %v2009
    %v2038 = vsel %vm2033, %v1953, %v2010
    %v2039 = vsel %vm2033, %v1954, %v2011
    %v2040 = vsel %vm2033, %v1955, %v2012
    %v2041 = vsel %vm2033, %v1956, %v2013
    %v2042 = vsel %vm2033, %v1957, %v2014
    %v2043 = vsel %vm2033, %v1958, %v2015
    %v2044 = vsel %vm2033, %v1959, %v2016
    %v2045 = vsel %vm2033, %v1960, %v2017
    %v2046 = vsel %vm2033, %v1961, %v2018
    %v2047 = vsel %vm2033, %v1962, %v2019
    %v2048 = vsel %vm2033, %v1963, %v2020
    %v2049 = vsel %vm2033, %v1964, %v2021
    %v2050 = vsel %vm2033, %v1965, %v2022
    %v2051 = vsel %vm2033, %v1966, %v2023
    %v2052 = vsel %vm2033, %v1967, %v2024
    %v2053 = vsel %vm2033, %v1968, %v2025
    %v2054 = vsel %vm2033, %v1969, %v2026
    %v2055 = vsel %vm2033, %v1970, %v2027
    %v2056 = vsel %vm2033, %v1971, %v2028
    %v2057 = vsel %vm2033, %v1972, %v2029
    %v2058 = vsel %vm2033, %v1973, %v2030
    %2059 = vst [vmem:[#allocation10] sm:$0xff] %v2034
    %2060 = vst [vmem:[#allocation10 + $0x8] sm:$0xff] %v2035
    %2061 = vst [vmem:[#allocation10 + $0x10] sm:$0xff] %v2036
    %2062 = vst [vmem:[#allocation10 + $0x18] sm:$0xff] %v2037
    %2063 = vst [vmem:[#allocation10 + $0x20] sm:$0xff] %v2038
    %2064 = vst [vmem:[#allocation10 + $0x28] sm:$0xff] %v2039
    %2065 = vst [vmem:[#allocation10 + $0x30] sm:$0xff] %v2040
    %2066 = vst [vmem:[#allocation10 + $0x38] sm:$0xff] %v2041
    %2067 = vst [vmem:[#allocation10 + $0x40] sm:$0xff] %v2042
    %2068 = vst [vmem:[#allocation10 + $0x48] sm:$0xff] %v2043
    %2069 = vst [vmem:[#allocation10 + $0x50] sm:$0xff] %v2044
    %2070 = vst [vmem:[#allocation10 + $0x58] sm:$0xff] %v2045
    %2071 = vst [vmem:[#allocation10 + $0x60] sm:$0xff] %v2046
    %2072 = vst [vmem:[#allocation10 + $0x68] sm:$0xff] %v2047
    %2073 = vst [vmem:[#allocation10 + $0x70] sm:$0xff] %v2048
    %2074 = vst [vmem:[#allocation10 + $0x78] sm:$0xff] %v2049
    %2075 = vst [vmem:[#allocation10 + $0x80] sm:$0xff] %v2050
    %2076 = vst [vmem:[#allocation10 + $0x88] sm:$0xff] %v2051
    %2077 = vst [vmem:[#allocation10 + $0x90] sm:$0xff] %v2052
    %2078 = vst [vmem:[#allocation10 + $0x98] sm:$0xff] %v2053
    %2079 = vst [vmem:[#allocation10 + $0xa0] sm:$0xff] %v2054
    %2080 = vst [vmem:[#allocation10 + $0xa8] sm:$0xff] %v2055
    %2081 = vst [vmem:[#allocation10 + $0xb0] sm:$0xff] %v2056
    %2082 = vst [vmem:[#allocation10 + $0xb8] sm:$0xff] %v2057
    %2083 = vst [vmem:[#allocation10 + $0xc0] sm:$0xff] %v2058
    // Predicated region
    $region50: #{tpu_custom_call.1} parent=1 // pred_check
      _
    $region51: #{tpu_custom_call.1} parent=1 // pred_check_branch
      %2085 = sbr.rel (0) target = $region53
    $region52: #{tpu_custom_call.1} parent=1 // pred_region
      %s2087 = ssub.s32 3200, 3200
      %2088 = vsyncadd [#allocation4], %s2087
      %s2089 = sshll.u32 [#allocation10], 4
      %s2090 = int_to_ptr.vmem [resolvable:$true] %s2089
      %2095 = dma.vmem_to_hbm [thread:$0]  %s2090, 3200, %s8, [#allocation4], 128, 128, 8
    $region53: #{tpu_custom_call.1} parent=1 // pred_fallthru
      _
    // Predicated region
    $region54: #{tpu_custom_call.1} parent=1 // pred_check
      _
    $region55: #{tpu_custom_call.1} parent=1 // pred_check_branch
      %2097 = sbr.rel (0) target = $region57
    $region56: #{tpu_custom_call.1} parent=1 // pred_region
      %2098 = dma.done [#allocation4], 3200
    $region57: #{tpu_custom_call.1} parent=1 // pred_fallthru
      _
    %2099 = vsyncpa [#allocation3], 1
    %2100 = vsyncpa [#allocation6], 1
    %2101 = vsyncpa [#allocation9], 1
    %2102 = vsyncpa [#allocation4], 1

</llo_original>
